<compile_context>
chip_gen: v7x
topology: tpu7x:2x2x1
jax: 0.10.0
libtpu: 0.0.40
codegen_flags: <defaults>
</compile_context>

<pallas_src>
import functools

import jax
import jax.numpy as jnp
from jax import lax
from jax.experimental import pallas as pl
from jax.experimental.pallas import tpu as pltpu

EPS = 1e-5
NUM_GROUPS = 32


def _unet_output_kernel(x_ref, gamma_ref, beta_ref, ggc_ref, gcg_ref,
                        w_ref, b_ref, hidx_ref, widx_ref, o_ref,
                        *, H, W, cout, cp):
    C = x_ref.shape[1]
    HW = H * W
    G = ggc_ref.shape[0]
    cg = C // G
    inv_cnt = 1.0 / float(cg * HW)

    x = x_ref[0].astype(jnp.float32)                                    # (C, HW)

    # ---- GroupNorm (two-pass / centered variance) ----
    gs = jnp.dot(ggc_ref[...], x, preferred_element_type=jnp.float32)   # (G, HW)
    gmean = jnp.sum(gs, axis=1, keepdims=True) * inv_cnt                # (G, 1)
    mean_c = jnp.dot(gcg_ref[...], jnp.broadcast_to(gmean, (G, HW)),
                     preferred_element_type=jnp.float32)                # (C, HW)
    xc = x - mean_c
    gs2 = jnp.dot(ggc_ref[...], xc * xc,
                  preferred_element_type=jnp.float32)                   # (G, HW)
    gvar = jnp.sum(gs2, axis=1, keepdims=True) * inv_cnt                # (G, 1)
    ginv = lax.rsqrt(gvar + EPS)                                        # (G, 1)
    inv_c = jnp.dot(gcg_ref[...], jnp.broadcast_to(ginv, (G, HW)),
                    preferred_element_type=jnp.float32)                 # (C, HW)
    y = xc * inv_c * gamma_ref[...] + beta_ref[...]                     # (C, HW)

    # ---- SiLU ----
    y = y * jax.nn.sigmoid(y)

    # ---- Conv2d 3x3 pad=1: one fused matmul + shift-after-matmul ----
    # TODO(synk): for production shapes cast y / w to bfloat16 here (native MXU
    # path, half the VMEM traffic); kept f32 so the tiny test matches the f32
    # reference within tight tolerance.
    p = jnp.dot(w_ref[...], y, preferred_element_type=jnp.float32)      # (9*cp, HW)

    h_idx = hidx_ref[...]                                               # (1, HW)
    w_idx = widx_ref[...]                                               # (1, HW)

    acc = None
    for dy in range(3):
        for dx in range(3):
            k = dy * 3 + dx
            r, s = dy - 1, dx - 1
            off = r * W + s                      # flat source offset for this tap
            tap = p[k * cp:(k + 1) * cp, :]      # (cp, HW), 8-sublane aligned slice
            if off != 0:
                tap = pltpu.roll(tap, shift=(-off) % HW, axis=1)
            mask = None
            if r < 0:
                mask = h_idx >= -r
            elif r > 0:
                mask = h_idx < (H - r)
            if s < 0:
                wm = w_idx >= -s
                mask = wm if mask is None else (mask & wm)
            elif s > 0:
                wm = w_idx < (W - s)
                mask = wm if mask is None else (mask & wm)
            if mask is not None:
                tap = jnp.where(mask, tap, 0.0)
            acc = tap if acc is None else acc + tap

    out = acc[:cout, :] + b_ref[...]                                    # (cout, HW)
    o_ref[0] = out.astype(o_ref.dtype)


def unet_output_layer(x_nchw, gamma, beta, weight, bias):
    """Forward pass matching the PyTorch UNETOutputLayer. x_nchw: (N, C, H, W)."""
    N, C, H, W = x_nchw.shape
    Cout = weight.shape[0]
    HW = H * W
    G = NUM_GROUPS
    CP = ((Cout + 7) // 8) * 8            # per-tap rows padded to a full sublane tile

    x_flat = x_nchw.reshape(N, C, HW)     # free reshape, no transpose

    gamma2 = gamma.reshape(C, 1).astype(jnp.float32)
    beta2 = beta.reshape(C, 1).astype(jnp.float32)
    bias2 = bias.reshape(Cout, 1).astype(jnp.float32)

    # Group-membership matrices (skinny, instead of a dense CxC averaging matrix).
    gid = jnp.arange(C, dtype=jnp.int32) // (C // G)
    ggc = (jnp.arange(G, dtype=jnp.int32)[:, None] == gid[None, :]).astype(jnp.float32)  # (G, C)
    gcg = jnp.transpose(ggc)                                                              # (C, G)

    # Conv weight (Cout, Cin, 3, 3) -> packed (9*CP, Cin); row k*CP+co = w[co,:,dy,dx].
    w_t = jnp.transpose(weight, (2, 3, 0, 1)).astype(jnp.float32).reshape(9, Cout, C)
    w_big = jnp.zeros((9, CP, C), jnp.float32).at[:, :Cout, :].set(w_t).reshape(9 * CP, C)

    # Flat-index helpers for the 3x3 boundary masks.
    hidx = (jnp.arange(HW, dtype=jnp.int32) // W).reshape(1, HW)
    widx = (jnp.arange(HW, dtype=jnp.int32) % W).reshape(1, HW)

    kernel = functools.partial(_unet_output_kernel, H=H, W=W, cout=Cout, cp=CP)

    out_flat = pl.pallas_call(
        kernel,
        out_shape=jax.ShapeDtypeStruct((N, Cout, HW), x_nchw.dtype),
        grid_spec=pltpu.PrefetchScalarGridSpec(
            num_scalar_prefetch=0,
            grid=(N,),
            in_specs=[
                pl.BlockSpec((1, C, HW), lambda n: (n, 0, 0)),
                pl.BlockSpec((C, 1), lambda n: (0, 0)),
                pl.BlockSpec((C, 1), lambda n: (0, 0)),
                pl.BlockSpec((G, C), lambda n: (0, 0)),
                pl.BlockSpec((C, G), lambda n: (0, 0)),
                pl.BlockSpec((9 * CP, C), lambda n: (0, 0)),
                pl.BlockSpec((Cout, 1), lambda n: (0, 0)),
                pl.BlockSpec((1, HW), lambda n: (0, 0)),
                pl.BlockSpec((1, HW), lambda n: (0, 0)),
            ],
            out_specs=pl.BlockSpec((1, Cout, HW), lambda n: (n, 0, 0)),
        ),
        compiler_params=pltpu.CompilerParams(
            dimension_semantics=("parallel",)),
    )(x_flat, gamma2, beta2, ggc, gcg, w_big, bias2, hidx, widx)

    return out_flat.reshape(N, Cout, H, W)    # already NCHW, free reshape


def ref_forward(x, gamma, beta, weight, bias):
    """Pure-JAX reference of the PyTorch forward (NCHW)."""
    N, C, H, W = x.shape
    xr = x.reshape(N, NUM_GROUPS, C // NUM_GROUPS, H, W)
    mean = xr.mean(axis=(2, 3, 4), keepdims=True)
    var = xr.var(axis=(2, 3, 4), keepdims=True)
    xn = (xr - mean) / jnp.sqrt(var + EPS)
    xn = xn.reshape(N, C, H, W) * gamma[None, :, None, None] \
         + beta[None, :, None, None]
    xs = xn * jax.nn.sigmoid(xn)
    y = lax.conv_general_dilated(
        xs, weight, window_strides=(1, 1), padding="SAME",
        dimension_numbers=("NCHW", "OIHW", "NCHW"))
    return y + bias[None, :, None, None]


if __name__ == "__main__":
    # GroupNorm(32) requires C % 32 == 0.
    N, Cin, Cout, H, W = 2, 64, 4, 16, 16

    key = jax.random.PRNGKey(0)
    kx, kg, kb, kw, kbi = jax.random.split(key, 5)
    x = jax.random.normal(kx, (N, Cin, H, W), dtype=jnp.float32)
    gamma = 1.0 + 0.1 * jax.random.normal(kg, (Cin,), dtype=jnp.float32)
    beta = 0.05 * jax.random.normal(kb, (Cin,), dtype=jnp.float32)
    weight = 0.05 * jax.random.normal(kw, (Cout, Cin, 3, 3), dtype=jnp.float32)
    bias = 0.01 * jax.random.normal(kbi, (Cout,), dtype=jnp.float32)

    out = jax.block_until_ready(unet_output_layer(x, gamma, beta, weight, bias))
    ref = jax.block_until_ready(ref_forward(x, gamma, beta, weight, bias))

    assert out.shape == (N, Cout, H, W), out.shape
    max_err = float(jnp.max(jnp.abs(out - ref)))
    assert jnp.allclose(out, ref, rtol=2e-3, atol=2e-3), max_err

    print("KERNEL_OK")
</pallas_src>

<mosaic_0001>
module attributes {stable_mosaic.version = 11 : i64} {
  func.func @_unet_output_kernel(%arg0: i32, %arg1: memref<1x64x256xf32, #tpu.memory_space<vmem>>, %arg2: memref<64x1xf32, #tpu.memory_space<vmem>>, %arg3: memref<64x1xf32, #tpu.memory_space<vmem>>, %arg4: memref<32x64xf32, #tpu.memory_space<vmem>>, %arg5: memref<64x32xf32, #tpu.memory_space<vmem>>, %arg6: memref<72x64xf32, #tpu.memory_space<vmem>>, %arg7: memref<4x1xf32, #tpu.memory_space<vmem>>, %arg8: memref<1x256xi32, #tpu.memory_space<vmem>>, %arg9: memref<1x256xi32, #tpu.memory_space<vmem>>, %arg10: memref<1x4x256xf32, #tpu.memory_space<vmem>>) attributes {dimension_semantics = [#tpu.dimension_semantics<parallel>], iteration_bounds = array<i64: 2>, scalar_prefetch = 0 : i64, scratch_operands = 0 : i64, tpu.core_type = #tpu.core_type<tc>, window_params = [{transform_indices = @transform_0, window_bounds = array<i64: 1, 64, 256>}, {pipeline_mode = #tpu.pipeline_mode<synchronous>, transform_indices = @transform_1, window_bounds = array<i64: 64, 1>}, {pipeline_mode = #tpu.pipeline_mode<synchronous>, transform_indices = @transform_2, window_bounds = array<i64: 64, 1>}, {pipeline_mode = #tpu.pipeline_mode<synchronous>, transform_indices = @transform_3, window_bounds = array<i64: 32, 64>}, {pipeline_mode = #tpu.pipeline_mode<synchronous>, transform_indices = @transform_4, window_bounds = array<i64: 64, 32>}, {pipeline_mode = #tpu.pipeline_mode<synchronous>, transform_indices = @transform_5, window_bounds = array<i64: 72, 64>}, {pipeline_mode = #tpu.pipeline_mode<synchronous>, transform_indices = @transform_6, window_bounds = array<i64: 4, 1>}, {pipeline_mode = #tpu.pipeline_mode<synchronous>, transform_indices = @transform_7, window_bounds = array<i64: 1, 256>}, {pipeline_mode = #tpu.pipeline_mode<synchronous>, transform_indices = @transform_8, window_bounds = array<i64: 1, 256>}, {transform_indices = @transform_9, window_bounds = array<i64: 1, 4, 256>}]} {
    %c0 = arith.constant 0 : index
    %c0_0 = arith.constant 0 : index
    %c0_1 = arith.constant 0 : index
    %0 = vector.load %arg1[%c0, %c0_0, %c0_1] : memref<1x64x256xf32, #tpu.memory_space<vmem>>, vector<1x64x256xf32>
    %1 = vector.shape_cast %0 : vector<1x64x256xf32> to vector<64x256xf32>
    %c0_2 = arith.constant 0 : index
    %c0_3 = arith.constant 0 : index
    %2 = vector.load %arg4[%c0_2, %c0_3] : memref<32x64xf32, #tpu.memory_space<vmem>>, vector<32x64xf32>
    %cst = arith.constant dense<0.000000e+00> : vector<32x256xf32>
    %3 = tpu.matmul %2, %1, %cst {dimension_numbers = #tpu.dot_dimension_numbers<[1], [0], [0], [1], [0, 0, 1, 1], [], []>} : vector<32x64xf32>, vector<64x256xf32>, vector<32x256xf32> -> vector<32x256xf32>
    %cst_4 = arith.constant dense<0.000000e+00> : vector<32xf32>
    %4 = vector.multi_reduction <add>, %3, %cst_4 [1] : vector<32x256xf32> to vector<32xf32>
    %5 = vector.shape_cast %4 : vector<32xf32> to vector<32x1xf32>
    %cst_5 = arith.constant 0.001953125 : f32
    %6 = vector.broadcast %cst_5 : f32 to vector<32x1xf32>
    %7 = arith.mulf %5, %6 : vector<32x1xf32>
    %c0_6 = arith.constant 0 : index
    %c0_7 = arith.constant 0 : index
    %8 = vector.load %arg5[%c0_6, %c0_7] : memref<64x32xf32, #tpu.memory_space<vmem>>, vector<64x32xf32>
    %9 = vector.shape_cast %7 : vector<32x1xf32> to vector<32x1xf32>
    %10 = vector.broadcast %9 : vector<32x1xf32> to vector<32x256xf32>
    %cst_8 = arith.constant dense<0.000000e+00> : vector<64x256xf32>
    %11 = tpu.matmul %8, %10, %cst_8 {dimension_numbers = #tpu.dot_dimension_numbers<[1], [0], [0], [1], [0, 0, 1, 1], [], []>} : vector<64x32xf32>, vector<32x256xf32>, vector<64x256xf32> -> vector<64x256xf32>
    %12 = arith.subf %1, %11 : vector<64x256xf32>
    %c0_9 = arith.constant 0 : index
    %c0_10 = arith.constant 0 : index
    %13 = vector.load %arg4[%c0_9, %c0_10] : memref<32x64xf32, #tpu.memory_space<vmem>>, vector<32x64xf32>
    %14 = arith.mulf %12, %12 : vector<64x256xf32>
    %cst_11 = arith.constant dense<0.000000e+00> : vector<32x256xf32>
    %15 = tpu.matmul %13, %14, %cst_11 {dimension_numbers = #tpu.dot_dimension_numbers<[1], [0], [0], [1], [0, 0, 1, 1], [], []>} : vector<32x64xf32>, vector<64x256xf32>, vector<32x256xf32> -> vector<32x256xf32>
    %cst_12 = arith.constant dense<0.000000e+00> : vector<32xf32>
    %16 = vector.multi_reduction <add>, %15, %cst_12 [1] : vector<32x256xf32> to vector<32xf32>
    %17 = vector.shape_cast %16 : vector<32xf32> to vector<32x1xf32>
    %cst_13 = arith.constant 0.001953125 : f32
    %18 = vector.broadcast %cst_13 : f32 to vector<32x1xf32>
    %19 = arith.mulf %17, %18 : vector<32x1xf32>
    %cst_14 = arith.constant 9.99999974E-6 : f32
    %20 = vector.broadcast %cst_14 : f32 to vector<32x1xf32>
    %21 = arith.addf %19, %20 : vector<32x1xf32>
    %22 = math.rsqrt %21 : vector<32x1xf32>
    %c0_15 = arith.constant 0 : index
    %c0_16 = arith.constant 0 : index
    %23 = vector.load %arg5[%c0_15, %c0_16] : memref<64x32xf32, #tpu.memory_space<vmem>>, vector<64x32xf32>
    %24 = vector.shape_cast %22 : vector<32x1xf32> to vector<32x1xf32>
    %25 = vector.broadcast %24 : vector<32x1xf32> to vector<32x256xf32>
    %cst_17 = arith.constant dense<0.000000e+00> : vector<64x256xf32>
    %26 = tpu.matmul %23, %25, %cst_17 {dimension_numbers = #tpu.dot_dimension_numbers<[1], [0], [0], [1], [0, 0, 1, 1], [], []>} : vector<64x32xf32>, vector<32x256xf32>, vector<64x256xf32> -> vector<64x256xf32>
    %27 = arith.mulf %12, %26 : vector<64x256xf32>
    %c0_18 = arith.constant 0 : index
    %c0_19 = arith.constant 0 : index
    %28 = vector.load %arg2[%c0_18, %c0_19] : memref<64x1xf32, #tpu.memory_space<vmem>>, vector<64x1xf32>
    %29 = vector.broadcast %28 : vector<64x1xf32> to vector<64x256xf32>
    %30 = arith.mulf %27, %29 : vector<64x256xf32>
    %c0_20 = arith.constant 0 : index
    %c0_21 = arith.constant 0 : index
    %31 = vector.load %arg3[%c0_20, %c0_21] : memref<64x1xf32, #tpu.memory_space<vmem>>, vector<64x1xf32>
    %32 = vector.broadcast %31 : vector<64x1xf32> to vector<64x256xf32>
    %33 = arith.addf %30, %32 : vector<64x256xf32>
    %34 = arith.negf %33 : vector<64x256xf32>
    %35 = math.exp %34 : vector<64x256xf32>
    %cst_22 = arith.constant 1.000000e+00 : f32
    %36 = vector.broadcast %cst_22 : f32 to vector<64x256xf32>
    %37 = arith.addf %36, %35 : vector<64x256xf32>
    %38 = arith.divf %36, %37 : vector<64x256xf32>
    %39 = arith.mulf %33, %38 : vector<64x256xf32>
    %c0_23 = arith.constant 0 : index
    %c0_24 = arith.constant 0 : index
    %40 = vector.load %arg6[%c0_23, %c0_24] : memref<72x64xf32, #tpu.memory_space<vmem>>, vector<72x64xf32>
    %cst_25 = arith.constant dense<0.000000e+00> : vector<72x256xf32>
    %41 = tpu.matmul %40, %39, %cst_25 {dimension_numbers = #tpu.dot_dimension_numbers<[1], [0], [0], [1], [0, 0, 1, 1], [], []>} : vector<72x64xf32>, vector<64x256xf32>, vector<72x256xf32> -> vector<72x256xf32>
    %c0_26 = arith.constant 0 : index
    %c0_27 = arith.constant 0 : index
    %42 = vector.load %arg8[%c0_26, %c0_27] : memref<1x256xi32, #tpu.memory_space<vmem>>, vector<1x256xi32>
    %c0_28 = arith.constant 0 : index
    %c0_29 = arith.constant 0 : index
    %43 = vector.load %arg9[%c0_28, %c0_29] : memref<1x256xi32, #tpu.memory_space<vmem>>, vector<1x256xi32>
    %44 = vector.extract_strided_slice %41 {offsets = [0, 0], sizes = [8, 256], strides = [1, 1]} : vector<72x256xf32> to vector<8x256xf32>
    %c17_i32 = arith.constant 17 : i32
    %45 = tpu.dynamic_rotate %44 by %c17_i32 dim 1 : vector<8x256xf32>, i32 -> vector<8x256xf32>
    %c1_i32 = arith.constant 1 : i32
    %46 = vector.broadcast %c1_i32 : i32 to vector<1x256xi32>
    %47 = arith.cmpi sge, %42, %46 : vector<1x256xi32>
    %c1_i32_30 = arith.constant 1 : i32
    %48 = vector.broadcast %c1_i32_30 : i32 to vector<1x256xi32>
    %49 = arith.cmpi sge, %43, %48 : vector<1x256xi32>
    %50 = arith.andi %47, %49 : vector<1x256xi1>
    %cst_31 = arith.constant 0.000000e+00 : f32
    %51 = vector.shape_cast %50 : vector<1x256xi1> to vector<1x256xi1>
    %52 = vector.broadcast %51 : vector<1x256xi1> to vector<8x256xi1>
    %53 = vector.broadcast %cst_31 : f32 to vector<8x256xf32>
    %54 = arith.select %52, %45, %53 : vector<8x256xi1>, vector<8x256xf32>
    %55 = vector.extract_strided_slice %41 {offsets = [8, 0], sizes = [8, 256], strides = [1, 1]} : vector<72x256xf32> to vector<8x256xf32>
    %c16_i32 = arith.constant 16 : i32
    %56 = tpu.dynamic_rotate %55 by %c16_i32 dim 1 : vector<8x256xf32>, i32 -> vector<8x256xf32>
    %c1_i32_32 = arith.constant 1 : i32
    %57 = vector.broadcast %c1_i32_32 : i32 to vector<1x256xi32>
    %58 = arith.cmpi sge, %42, %57 : vector<1x256xi32>
    %cst_33 = arith.constant 0.000000e+00 : f32
    %59 = vector.shape_cast %58 : vector<1x256xi1> to vector<1x256xi1>
    %60 = vector.broadcast %59 : vector<1x256xi1> to vector<8x256xi1>
    %61 = vector.broadcast %cst_33 : f32 to vector<8x256xf32>
    %62 = arith.select %60, %56, %61 : vector<8x256xi1>, vector<8x256xf32>
    %63 = arith.addf %54, %62 : vector<8x256xf32>
    %64 = vector.extract_strided_slice %41 {offsets = [16, 0], sizes = [8, 256], strides = [1, 1]} : vector<72x256xf32> to vector<8x256xf32>
    %c15_i32 = arith.constant 15 : i32
    %65 = tpu.dynamic_rotate %64 by %c15_i32 dim 1 : vector<8x256xf32>, i32 -> vector<8x256xf32>
    %c1_i32_34 = arith.constant 1 : i32
    %66 = vector.broadcast %c1_i32_34 : i32 to vector<1x256xi32>
    %67 = arith.cmpi sge, %42, %66 : vector<1x256xi32>
    %c15_i32_35 = arith.constant 15 : i32
    %68 = vector.broadcast %c15_i32_35 : i32 to vector<1x256xi32>
    %69 = arith.cmpi slt, %43, %68 : vector<1x256xi32>
    %70 = arith.andi %67, %69 : vector<1x256xi1>
    %cst_36 = arith.constant 0.000000e+00 : f32
    %71 = vector.shape_cast %70 : vector<1x256xi1> to vector<1x256xi1>
    %72 = vector.broadcast %71 : vector<1x256xi1> to vector<8x256xi1>
    %73 = vector.broadcast %cst_36 : f32 to vector<8x256xf32>
    %74 = arith.select %72, %65, %73 : vector<8x256xi1>, vector<8x256xf32>
    %75 = arith.addf %63, %74 : vector<8x256xf32>
    %76 = vector.extract_strided_slice %41 {offsets = [24, 0], sizes = [8, 256], strides = [1, 1]} : vector<72x256xf32> to vector<8x256xf32>
    %c1_i32_37 = arith.constant 1 : i32
    %77 = tpu.dynamic_rotate %76 by %c1_i32_37 dim 1 : vector<8x256xf32>, i32 -> vector<8x256xf32>
    %c1_i32_38 = arith.constant 1 : i32
    %78 = vector.broadcast %c1_i32_38 : i32 to vector<1x256xi32>
    %79 = arith.cmpi sge, %43, %78 : vector<1x256xi32>
    %cst_39 = arith.constant 0.000000e+00 : f32
    %80 = vector.shape_cast %79 : vector<1x256xi1> to vector<1x256xi1>
    %81 = vector.broadcast %80 : vector<1x256xi1> to vector<8x256xi1>
    %82 = vector.broadcast %cst_39 : f32 to vector<8x256xf32>
    %83 = arith.select %81, %77, %82 : vector<8x256xi1>, vector<8x256xf32>
    %84 = arith.addf %75, %83 : vector<8x256xf32>
    %85 = vector.extract_strided_slice %41 {offsets = [32, 0], sizes = [8, 256], strides = [1, 1]} : vector<72x256xf32> to vector<8x256xf32>
    %86 = arith.addf %84, %85 : vector<8x256xf32>
    %87 = vector.extract_strided_slice %41 {offsets = [40, 0], sizes = [8, 256], strides = [1, 1]} : vector<72x256xf32> to vector<8x256xf32>
    %c255_i32 = arith.constant 255 : i32
    %88 = tpu.dynamic_rotate %87 by %c255_i32 dim 1 : vector<8x256xf32>, i32 -> vector<8x256xf32>
    %c15_i32_40 = arith.constant 15 : i32
    %89 = vector.broadcast %c15_i32_40 : i32 to vector<1x256xi32>
    %90 = arith.cmpi slt, %43, %89 : vector<1x256xi32>
    %cst_41 = arith.constant 0.000000e+00 : f32
    %91 = vector.shape_cast %90 : vector<1x256xi1> to vector<1x256xi1>
    %92 = vector.broadcast %91 : vector<1x256xi1> to vector<8x256xi1>
    %93 = vector.broadcast %cst_41 : f32 to vector<8x256xf32>
    %94 = arith.select %92, %88, %93 : vector<8x256xi1>, vector<8x256xf32>
    %95 = arith.addf %86, %94 : vector<8x256xf32>
    %96 = vector.extract_strided_slice %41 {offsets = [48, 0], sizes = [8, 256], strides = [1, 1]} : vector<72x256xf32> to vector<8x256xf32>
    %c241_i32 = arith.constant 241 : i32
    %97 = tpu.dynamic_rotate %96 by %c241_i32 dim 1 : vector<8x256xf32>, i32 -> vector<8x256xf32>
    %c15_i32_42 = arith.constant 15 : i32
    %98 = vector.broadcast %c15_i32_42 : i32 to vector<1x256xi32>
    %99 = arith.cmpi slt, %42, %98 : vector<1x256xi32>
    %c1_i32_43 = arith.constant 1 : i32
    %100 = vector.broadcast %c1_i32_43 : i32 to vector<1x256xi32>
    %101 = arith.cmpi sge, %43, %100 : vector<1x256xi32>
    %102 = arith.andi %99, %101 : vector<1x256xi1>
    %cst_44 = arith.constant 0.000000e+00 : f32
    %103 = vector.shape_cast %102 : vector<1x256xi1> to vector<1x256xi1>
    %104 = vector.broadcast %103 : vector<1x256xi1> to vector<8x256xi1>
    %105 = vector.broadcast %cst_44 : f32 to vector<8x256xf32>
    %106 = arith.select %104, %97, %105 : vector<8x256xi1>, vector<8x256xf32>
    %107 = arith.addf %95, %106 : vector<8x256xf32>
    %108 = vector.extract_strided_slice %41 {offsets = [56, 0], sizes = [8, 256], strides = [1, 1]} : vector<72x256xf32> to vector<8x256xf32>
    %c240_i32 = arith.constant 240 : i32
    %109 = tpu.dynamic_rotate %108 by %c240_i32 dim 1 : vector<8x256xf32>, i32 -> vector<8x256xf32>
    %c15_i32_45 = arith.constant 15 : i32
    %110 = vector.broadcast %c15_i32_45 : i32 to vector<1x256xi32>
    %111 = arith.cmpi slt, %42, %110 : vector<1x256xi32>
    %cst_46 = arith.constant 0.000000e+00 : f32
    %112 = vector.shape_cast %111 : vector<1x256xi1> to vector<1x256xi1>
    %113 = vector.broadcast %112 : vector<1x256xi1> to vector<8x256xi1>
    %114 = vector.broadcast %cst_46 : f32 to vector<8x256xf32>
    %115 = arith.select %113, %109, %114 : vector<8x256xi1>, vector<8x256xf32>
    %116 = arith.addf %107, %115 : vector<8x256xf32>
    %117 = vector.extract_strided_slice %41 {offsets = [64, 0], sizes = [8, 256], strides = [1, 1]} : vector<72x256xf32> to vector<8x256xf32>
    %c239_i32 = arith.constant 239 : i32
    %118 = tpu.dynamic_rotate %117 by %c239_i32 dim 1 : vector<8x256xf32>, i32 -> vector<8x256xf32>
    %c15_i32_47 = arith.constant 15 : i32
    %119 = vector.broadcast %c15_i32_47 : i32 to vector<1x256xi32>
    %120 = arith.cmpi slt, %42, %119 : vector<1x256xi32>
    %c15_i32_48 = arith.constant 15 : i32
    %121 = vector.broadcast %c15_i32_48 : i32 to vector<1x256xi32>
    %122 = arith.cmpi slt, %43, %121 : vector<1x256xi32>
    %123 = arith.andi %120, %122 : vector<1x256xi1>
    %cst_49 = arith.constant 0.000000e+00 : f32
    %124 = vector.shape_cast %123 : vector<1x256xi1> to vector<1x256xi1>
    %125 = vector.broadcast %124 : vector<1x256xi1> to vector<8x256xi1>
    %126 = vector.broadcast %cst_49 : f32 to vector<8x256xf32>
    %127 = arith.select %125, %118, %126 : vector<8x256xi1>, vector<8x256xf32>
    %128 = arith.addf %116, %127 : vector<8x256xf32>
    %129 = vector.extract_strided_slice %128 {offsets = [0, 0], sizes = [4, 256], strides = [1, 1]} : vector<8x256xf32> to vector<4x256xf32>
    %c0_50 = arith.constant 0 : index
    %c0_51 = arith.constant 0 : index
    %130 = vector.load %arg7[%c0_50, %c0_51] : memref<4x1xf32, #tpu.memory_space<vmem>>, vector<4x1xf32>
    %131 = vector.broadcast %130 : vector<4x1xf32> to vector<4x256xf32>
    %132 = arith.addf %129, %131 : vector<4x256xf32>
    %c0_52 = arith.constant 0 : index
    %c0_53 = arith.constant 0 : index
    %c0_54 = arith.constant 0 : index
    %133 = vector.load %arg10[%c0_52, %c0_53, %c0_54] : memref<1x4x256xf32, #tpu.memory_space<vmem>>, vector<1x4x256xf32>
    %134 = vector.shape_cast %133 : vector<1x4x256xf32> to vector<4x256xf32>
    %135 = vector.shape_cast %132 : vector<4x256xf32> to vector<1x4x256xf32>
    tpu.vector_store %arg10[%c0_52, %c0_53, %c0_54], %135 {strides = array<i32>} : memref<1x4x256xf32, #tpu.memory_space<vmem>>, vector<1x4x256xf32>,
    return
  }
  func.func @transform_0(%arg0: i32) -> (i32, i32, i32) {
    %c0_i32 = arith.constant 0 : i32
    %c0_i32_0 = arith.constant 0 : i32
    %c0_i32_1 = arith.constant 0 : i32
    return %arg0, %c0_i32, %c0_i32_0 : i32, i32, i32
  }
  func.func @transform_1(%arg0: i32) -> (i32, i32) {
    %c0_i32 = arith.constant 0 : i32
    %c0_i32_0 = arith.constant 0 : i32
    %c0_i32_1 = arith.constant 0 : i32
    return %c0_i32, %c0_i32_0 : i32, i32
  }
  func.func @transform_2(%arg0: i32) -> (i32, i32) {
    %c0_i32 = arith.constant 0 : i32
    %c0_i32_0 = arith.constant 0 : i32
    %c0_i32_1 = arith.constant 0 : i32
    return %c0_i32, %c0_i32_0 : i32, i32
  }
  func.func @transform_3(%arg0: i32) -> (i32, i32) {
    %c0_i32 = arith.constant 0 : i32
    %c0_i32_0 = arith.constant 0 : i32
    %c0_i32_1 = arith.constant 0 : i32
    return %c0_i32, %c0_i32_0 : i32, i32
  }
  func.func @transform_4(%arg0: i32) -> (i32, i32) {
    %c0_i32 = arith.constant 0 : i32
    %c0_i32_0 = arith.constant 0 : i32
    %c0_i32_1 = arith.constant 0 : i32
    return %c0_i32, %c0_i32_0 : i32, i32
  }
  func.func @transform_5(%arg0: i32) -> (i32, i32) {
    %c0_i32 = arith.constant 0 : i32
    %c0_i32_0 = arith.constant 0 : i32
    %c0_i32_1 = arith.constant 0 : i32
    return %c0_i32, %c0_i32_0 : i32, i32
  }
  func.func @transform_6(%arg0: i32) -> (i32, i32) {
    %c0_i32 = arith.constant 0 : i32
    %c0_i32_0 = arith.constant 0 : i32
    %c0_i32_1 = arith.constant 0 : i32
    return %c0_i32, %c0_i32_0 : i32, i32
  }
  func.func @transform_7(%arg0: i32) -> (i32, i32) {
    %c0_i32 = arith.constant 0 : i32
    %c0_i32_0 = arith.constant 0 : i32
    %c0_i32_1 = arith.constant 0 : i32
    return %c0_i32, %c0_i32_0 : i32, i32
  }
  func.func @transform_8(%arg0: i32) -> (i32, i32) {
    %c0_i32 = arith.constant 0 : i32
    %c0_i32_0 = arith.constant 0 : i32
    %c0_i32_1 = arith.constant 0 : i32
    return %c0_i32, %c0_i32_0 : i32, i32
  }
  func.func @transform_9(%arg0: i32) -> (i32, i32, i32) {
    %c0_i32 = arith.constant 0 : i32
    %c0_i32_0 = arith.constant 0 : i32
    %c0_i32_1 = arith.constant 0 : i32
    return %arg0, %c0_i32, %c0_i32_0 : i32, i32, i32
  }
}

</mosaic_0001>

<llo_original>
// kernel: tpu_custom_call.1
$region0: #{tpu_custom_call.1}
  #allocation0 [shape = 'u32[]', space=smem, size = 0x4, offset = 0x4, fixed_abs, tag = 'smem constant byte address 0x4 - core index']
  #allocation1 [shape = 'u32[144,128]{1,0:T(1,128)}', space=vmem, size = 0x12000, scoped, tag = 'internal scratch']
  %s0 = inlined_call_operand.vmem [shape: f32[2,64,256], index: 0, kind: input, shape index: {}]
  %s1 = inlined_call_operand.vmem [shape: f32[64,1], index: 1, kind: input, shape index: {}]
  %s2 = inlined_call_operand.vmem [shape: f32[64,1], index: 2, kind: input, shape index: {}]
  %s3 = inlined_call_operand.hbm [shape: f32[32,64], index: 3, kind: input, shape index: {}]
  %s4 = inlined_call_operand.vmem [shape: f32[64,32], index: 4, kind: input, shape index: {}]
  %s5 = inlined_call_operand.vmem [shape: f32[72,64], index: 5, kind: input, shape index: {}]
  %s6 = inlined_call_operand.vmem [shape: f32[4,1], index: 6, kind: input, shape index: {}]
  %s7 = inlined_call_operand.vmem [shape: s32[1,256], index: 7, kind: input, shape index: {}]
  %s8 = inlined_call_operand.vmem [shape: s32[1,256], index: 8, kind: input, shape index: {}]
  %s9 = inlined_call_operand.hbm [shape: f32[2,4,256], index: 9, kind: output, shape index: {}]
  %s10 = sld [smem:[#allocation0]]
  $region73: #{tpu_custom_call.1} parent=0
    _
  %s12 = ssub.s32 1, %s10
  %s13 = scalar_select 0, %s12, %s10
  $region1: #{tpu_custom_call.1} parent=0
    #allocation2 [shape = 'u8[16384]{0}', space=vmem, size = 0x4000, scoped, tag = 'input window, operand 3, single buffered']
    #allocation3 [shape = 's32[2]{0}', space=sflag, size = 0x8, scoped, tag = 'scoped memory for tpu_custom_call.1']
    #allocation4 [shape = 's32[2]{0}', space=sflag, size = 0x8, scoped, tag = 'scoped memory for tpu_custom_call.1']
    #allocation5 [shape = 'u8[8192]{0}', space=vmem, size = 0x2000, scoped, tag = 'output window, operand 0']
    %14 = vsyncpa [#allocation3], 0
    %15 = vsyncpa [#allocation4], 0
    %s16 = scalar_lea.sflag [#allocation4], 1
    %17 = vsyncpa %s16, 0
    loop: start=0, step=1, limit=4
    $region2: #{tpu_custom_call.1} parent=1 // loop_pre_header
      _
    $region3: #{tpu_custom_call.1} parent=1 // loop_header
      %s19 = sphi 0, %s23
      %p20 = scmp.ge.s32.totalorder %s19, 4
      %s29 = sphi 0, %s31
      %s32 = sphi 0, %s29
      %s33 = sphi 0, %s32
      %s49 = sphi 0, %s33
      %s53 = sphi 0, %s53
      %s55 = sphi 0, %s53
      %s56 = sphi 0, %s55
      %s70 = sphi 0, %s56
      %s74 = sphi 0, %s74
      %s76 = sphi 0, %s74
      %s77 = sphi 0, %s76
      %s91 = sphi 0, %s77
      %s95 = sphi 0, %s95
      %s97 = sphi 0, %s95
      %s98 = sphi 0, %s97
      %s112 = sphi 0, %s98
      %s116 = sphi 0, %s116
      %s118 = sphi 0, %s116
      %s119 = sphi 0, %s118
      %s133 = sphi 0, %s119
      %s137 = sphi 0, %s137
      %s139 = sphi 0, %s137
      %s140 = sphi 0, %s139
      %s154 = sphi 0, %s140
      %s158 = sphi 0, %s158
      %s160 = sphi 0, %s158
      %s161 = sphi 0, %s160
      %s175 = sphi 0, %s161
      %s179 = sphi 0, %s179
      %s181 = sphi 0, %s179
      %s182 = sphi 0, %s181
      %s196 = sphi 0, %s182
      %s200 = sphi 0, %s200
      %s202 = sphi 0, %s200
      %s203 = sphi 0, %s202
      %s217 = sphi 0, %s203
      %s223 = sphi 0, %s225
      %s226 = sphi 0, %s223
      %s227 = sphi 0, %s226
      %s243 = sphi 0, %s227
    $region4: #{tpu_custom_call.1} parent=1 // loop_header_branch
      %22 = sbr.rel (%p20) target = $region8
    $region5: #{tpu_custom_call.1} parent=1 // loop_body
      %s24 = ssub.s32 %s19, 1
      %s25 = ssub.s32 %s19, 2
      %s26 = sadd.s32 %s19, 1
      %s27 = ssub.s32 %s19, %s26
      %p28 = scmp.eq.s32.totalorder %s27, 0
      %s30 = sadd.s32 %s29, 1
      %s31 = scalar_select %p28, %s29, %s30
      %p34 = pneg %p28
      %p35 = scmp.eq.s32.totalorder %s19, 1
      %p36 = por %p34, %p35
      %p37 = scmp.ne.s32.totalorder %s29, %s32
      %p38 = scmp.eq.s32.totalorder %s19, 0
      %p39 = por %p37, %p38
      %p40 = scmp.ne.s32.totalorder %s29, %s32
      %p41 = scmp.eq.s32.totalorder %s24, 1
      %p42 = por %p40, %p41
      %p43 = scmp.ne.s32.totalorder %s32, %s33
      %p44 = scmp.eq.s32.totalorder %s24, 0
      %p45 = por %p43, %p44
      %p46 = scmp.ne.s32.totalorder %s32, %s33
      %p47 = scmp.eq.s32.totalorder %s25, 1
      %p48 = por %p46, %p47
      %p50 = scmp.ne.s32.totalorder %s33, %s49
      %p51 = scmp.eq.s32.totalorder %s25, 0
      %p52 = por %p50, %p51
      %s54 = sadd.s32 %s53, 1
      %p57 = scmp.eq.s32.totalorder %s19, 1
      %p58 = scmp.ne.s32.totalorder %s53, %s55
      %p59 = scmp.eq.s32.totalorder %s19, 0
      %p60 = por %p58, %p59
      %p61 = scmp.ne.s32.totalorder %s53, %s55
      %p62 = scmp.eq.s32.totalorder %s24, 1
      %p63 = por %p61, %p62
      %p64 = scmp.ne.s32.totalorder %s55, %s56
      %p65 = scmp.eq.s32.totalorder %s24, 0
      %p66 = por %p64, %p65
      %p67 = scmp.ne.s32.totalorder %s55, %s56
      %p68 = scmp.eq.s32.totalorder %s25, 1
      %p69 = por %p67, %p68
      %p71 = scmp.ne.s32.totalorder %s56, %s70
      %p72 = scmp.eq.s32.totalorder %s25, 0
      %p73 = por %p71, %p72
      %s75 = sadd.s32 %s74, 1
      %p78 = scmp.eq.s32.totalorder %s19, 1
      %p79 = scmp.ne.s32.totalorder %s74, %s76
      %p80 = scmp.eq.s32.totalorder %s19, 0
      %p81 = por %p79, %p80
      %p82 = scmp.ne.s32.totalorder %s74, %s76
      %p83 = scmp.eq.s32.totalorder %s24, 1
      %p84 = por %p82, %p83
      %p85 = scmp.ne.s32.totalorder %s76, %s77
      %p86 = scmp.eq.s32.totalorder %s24, 0
      %p87 = por %p85, %p86
      %p88 = scmp.ne.s32.totalorder %s76, %s77
      %p89 = scmp.eq.s32.totalorder %s25, 1
      %p90 = por %p88, %p89
      %p92 = scmp.ne.s32.totalorder %s77, %s91
      %p93 = scmp.eq.s32.totalorder %s25, 0
      %p94 = por %p92, %p93
      %s96 = sadd.s32 %s95, 1
      %p99 = scmp.eq.s32.totalorder %s19, 1
      %p100 = scmp.ne.s32.totalorder %s95, %s97
      %p101 = scmp.eq.s32.totalorder %s19, 0
      %p102 = por %p100, %p101
      %p103 = scmp.ne.s32.totalorder %s95, %s97
      %p104 = scmp.eq.s32.totalorder %s24, 1
      %p105 = por %p103, %p104
      %p106 = scmp.ne.s32.totalorder %s97, %s98
      %p107 = scmp.eq.s32.totalorder %s24, 0
      %p108 = por %p106, %p107
      %p109 = scmp.ne.s32.totalorder %s97, %s98
      %p110 = scmp.eq.s32.totalorder %s25, 1
      %p111 = por %p109, %p110
      %p113 = scmp.ne.s32.totalorder %s98, %s112
      %p114 = scmp.eq.s32.totalorder %s25, 0
      %p115 = por %p113, %p114
      %s117 = sadd.s32 %s116, 1
      %p120 = scmp.eq.s32.totalorder %s19, 1
      %p121 = scmp.ne.s32.totalorder %s116, %s118
      %p122 = scmp.eq.s32.totalorder %s19, 0
      %p123 = por %p121, %p122
      %p124 = scmp.ne.s32.totalorder %s116, %s118
      %p125 = scmp.eq.s32.totalorder %s24, 1
      %p126 = por %p124, %p125
      %p127 = scmp.ne.s32.totalorder %s118, %s119
      %p128 = scmp.eq.s32.totalorder %s24, 0
      %p129 = por %p127, %p128
      %p130 = scmp.ne.s32.totalorder %s118, %s119
      %p131 = scmp.eq.s32.totalorder %s25, 1
      %p132 = por %p130, %p131
      %p134 = scmp.ne.s32.totalorder %s119, %s133
      %p135 = scmp.eq.s32.totalorder %s25, 0
      %p136 = por %p134, %p135
      %s138 = sadd.s32 %s137, 1
      %p141 = scmp.eq.s32.totalorder %s19, 1
      %p142 = scmp.ne.s32.totalorder %s137, %s139
      %p143 = scmp.eq.s32.totalorder %s19, 0
      %p144 = por %p142, %p143
      %p145 = scmp.ne.s32.totalorder %s137, %s139
      %p146 = scmp.eq.s32.totalorder %s24, 1
      %p147 = por %p145, %p146
      %p148 = scmp.ne.s32.totalorder %s139, %s140
      %p149 = scmp.eq.s32.totalorder %s24, 0
      %p150 = por %p148, %p149
      %p151 = scmp.ne.s32.totalorder %s139, %s140
      %p152 = scmp.eq.s32.totalorder %s25, 1
      %p153 = por %p151, %p152
      %p155 = scmp.ne.s32.totalorder %s140, %s154
      %p156 = scmp.eq.s32.totalorder %s25, 0
      %p157 = por %p155, %p156
      %s159 = sadd.s32 %s158, 1
      %p162 = scmp.eq.s32.totalorder %s19, 1
      %p163 = scmp.ne.s32.totalorder %s158, %s160
      %p164 = scmp.eq.s32.totalorder %s19, 0
      %p165 = por %p163, %p164
      %p166 = scmp.ne.s32.totalorder %s158, %s160
      %p167 = scmp.eq.s32.totalorder %s24, 1
      %p168 = por %p166, %p167
      %p169 = scmp.ne.s32.totalorder %s160, %s161
      %p170 = scmp.eq.s32.totalorder %s24, 0
      %p171 = por %p169, %p170
      %p172 = scmp.ne.s32.totalorder %s160, %s161
      %p173 = scmp.eq.s32.totalorder %s25, 1
      %p174 = por %p172, %p173
      %p176 = scmp.ne.s32.totalorder %s161, %s175
      %p177 = scmp.eq.s32.totalorder %s25, 0
      %p178 = por %p176, %p177
      %s180 = sadd.s32 %s179, 1
      %p183 = scmp.eq.s32.totalorder %s19, 1
      %p184 = scmp.ne.s32.totalorder %s179, %s181
      %p185 = scmp.eq.s32.totalorder %s19, 0
      %p186 = por %p184, %p185
      %p187 = scmp.ne.s32.totalorder %s179, %s181
      %p188 = scmp.eq.s32.totalorder %s24, 1
      %p189 = por %p187, %p188
      %p190 = scmp.ne.s32.totalorder %s181, %s182
      %p191 = scmp.eq.s32.totalorder %s24, 0
      %p192 = por %p190, %p191
      %p193 = scmp.ne.s32.totalorder %s181, %s182
      %p194 = scmp.eq.s32.totalorder %s25, 1
      %p195 = por %p193, %p194
      %p197 = scmp.ne.s32.totalorder %s182, %s196
      %p198 = scmp.eq.s32.totalorder %s25, 0
      %p199 = por %p197, %p198
      %s201 = sadd.s32 %s200, 1
      %p204 = scmp.eq.s32.totalorder %s19, 1
      %p205 = scmp.ne.s32.totalorder %s200, %s202
      %p206 = scmp.eq.s32.totalorder %s19, 0
      %p207 = por %p205, %p206
      %p208 = scmp.ne.s32.totalorder %s200, %s202
      %p209 = scmp.eq.s32.totalorder %s24, 1
      %p210 = por %p208, %p209
      %p211 = scmp.ne.s32.totalorder %s202, %s203
      %p212 = scmp.eq.s32.totalorder %s24, 0
      %p213 = por %p211, %p212
      %p214 = scmp.ne.s32.totalorder %s202, %s203
      %p215 = scmp.eq.s32.totalorder %s25, 1
      %p216 = por %p214, %p215
      %p218 = scmp.ne.s32.totalorder %s203, %s217
      %p219 = scmp.eq.s32.totalorder %s25, 0
      %p220 = por %p218, %p219
      %s221 = ssub.s32 %s19, %s26
      %p222 = scmp.eq.s32.totalorder %s221, 0
      %s224 = sadd.s32 %s223, 1
      %s225 = scalar_select %p222, %s223, %s224
      %p228 = pneg %p222
      %p229 = scmp.eq.s32.totalorder %s19, 1
      %p230 = por %p228, %p229
      %p231 = scmp.ne.s32.totalorder %s223, %s226
      %p232 = scmp.eq.s32.totalorder %s19, 0
      %p233 = por %p231, %p232
      %p234 = scmp.ne.s32.totalorder %s223, %s226
      %p235 = scmp.eq.s32.totalorder %s24, 1
      %p236 = por %p234, %p235
      %p237 = scmp.ne.s32.totalorder %s226, %s227
      %p238 = scmp.eq.s32.totalorder %s24, 0
      %p239 = por %p237, %p238
      %p240 = scmp.ne.s32.totalorder %s226, %s227
      %p241 = scmp.eq.s32.totalorder %s25, 1
      %p242 = por %p240, %p241
      %p244 = scmp.ne.s32.totalorder %s227, %s243
      %p245 = scmp.eq.s32.totalorder %s25, 0
      %p246 = por %p244, %p245
      %p247 = scmp.le.s32.totalorder 1, %s19
      %p248 = scmp.lt.s32.totalorder %s19, 3
      %p249 = pnand %p247, %p248
      %p250 = pneg %p249
      // Predicated region
      $region9: #{tpu_custom_call.1} parent=5 // pred_check
        _
      $region10: #{tpu_custom_call.1} parent=5 // pred_check_branch
        %252 = sbr.rel (%p249) target = $region12
      $region11: #{tpu_custom_call.1} parent=5 // pred_region
        %s253 = ssub.s32 %s19, 1
        // Predicated region
        $region13: #{tpu_custom_call.1} parent=11 // pred_check
          %p254 = pneg %p66
        $region14: #{tpu_custom_call.1} parent=11 // pred_check_branch
          %256 = sbr.rel (%p254) target = $region16
        $region15: #{tpu_custom_call.1} parent=11 // pred_region
          _
        $region16: #{tpu_custom_call.1} parent=11 // pred_fallthru
          _
        // Predicated region
        $region17: #{tpu_custom_call.1} parent=11 // pred_check
          %p257 = pneg %p87
        $region18: #{tpu_custom_call.1} parent=11 // pred_check_branch
          %259 = sbr.rel (%p257) target = $region20
        $region19: #{tpu_custom_call.1} parent=11 // pred_region
          _
        $region20: #{tpu_custom_call.1} parent=11 // pred_fallthru
          _
        // Predicated region
        $region21: #{tpu_custom_call.1} parent=11 // pred_check
          %p260 = pneg %p108
        $region22: #{tpu_custom_call.1} parent=11 // pred_check_branch
          %262 = sbr.rel (%p260) target = $region24
        $region23: #{tpu_custom_call.1} parent=11 // pred_region
          %s264 = ssub.s32 512, 512
          %265 = vsyncadd [#allocation3], %s264
          %s266 = sshll.u32 [#allocation2], 4
          %s267 = int_to_ptr.vmem [resolvable:$true] %s266
          %272 = dma.hbm_to_vmem [thread:$0]  %s3, 512, %s267, [#allocation3], 128, 128, 8
        $region24: #{tpu_custom_call.1} parent=11 // pred_fallthru
          _
        // Predicated region
        $region25: #{tpu_custom_call.1} parent=11 // pred_check
          %p273 = pneg %p129
        $region26: #{tpu_custom_call.1} parent=11 // pred_check_branch
          %275 = sbr.rel (%p273) target = $region28
        $region27: #{tpu_custom_call.1} parent=11 // pred_region
          _
        $region28: #{tpu_custom_call.1} parent=11 // pred_fallthru
          _
        // Predicated region
        $region29: #{tpu_custom_call.1} parent=11 // pred_check
          %p276 = pneg %p150
        $region30: #{tpu_custom_call.1} parent=11 // pred_check_branch
          %278 = sbr.rel (%p276) target = $region32
        $region31: #{tpu_custom_call.1} parent=11 // pred_region
          _
        $region32: #{tpu_custom_call.1} parent=11 // pred_fallthru
          _
        // Predicated region
        $region33: #{tpu_custom_call.1} parent=11 // pred_check
          %p279 = pneg %p171
        $region34: #{tpu_custom_call.1} parent=11 // pred_check_branch
          %281 = sbr.rel (%p279) target = $region36
        $region35: #{tpu_custom_call.1} parent=11 // pred_region
          _
        $region36: #{tpu_custom_call.1} parent=11 // pred_fallthru
          _
        // Predicated region
        $region37: #{tpu_custom_call.1} parent=11 // pred_check
          %p282 = pneg %p192
        $region38: #{tpu_custom_call.1} parent=11 // pred_check_branch
          %284 = sbr.rel (%p282) target = $region40
        $region39: #{tpu_custom_call.1} parent=11 // pred_region
          _
        $region40: #{tpu_custom_call.1} parent=11 // pred_fallthru
          _
        // Predicated region
        $region41: #{tpu_custom_call.1} parent=11 // pred_check
          %p285 = pneg %p213
        $region42: #{tpu_custom_call.1} parent=11 // pred_check_branch
          %287 = sbr.rel (%p285) target = $region44
        $region43: #{tpu_custom_call.1} parent=11 // pred_region
          _
        $region44: #{tpu_custom_call.1} parent=11 // pred_fallthru
          _
      $region12: #{tpu_custom_call.1} parent=5 // pred_fallthru
        _
      %p288 = scmp.lt.s32.totalorder %s19, 2
      // Predicated region
      $region45: #{tpu_custom_call.1} parent=5 // pred_check
        %p289 = pneg %p288
      $region46: #{tpu_custom_call.1} parent=5 // pred_check_branch
        %291 = sbr.rel (%p289) target = $region48
      $region47: #{tpu_custom_call.1} parent=5 // pred_region
        // Predicated region
        $region49: #{tpu_custom_call.1} parent=47 // pred_check
          %p292 = pneg %p39
        $region50: #{tpu_custom_call.1} parent=47 // pred_check_branch
          %294 = sbr.rel (%p292) target = $region52
        $region51: #{tpu_custom_call.1} parent=47 // pred_region
          %p295 = scmp.lt.s32.totalorder %s19, 1
          %s296 = scalar_select %p295, %s19, 1
          %s297 = smul.addr %s296, 16
          %s298 = smul.addr %s297, 8
          %s299 = scalar_lea.vmem %s0, %s298
        $region52: #{tpu_custom_call.1} parent=47 // pred_fallthru
          _
      $region48: #{tpu_custom_call.1} parent=5 // pred_fallthru
        _
      %p300 = scmp.le.s32.totalorder 1, %s19
      %p301 = scmp.lt.s32.totalorder %s19, 3
      %p302 = pnand %p300, %p301
      %p303 = pneg %p302
      // Predicated region
      $region53: #{tpu_custom_call.1} parent=5 // pred_check
        _
      $region54: #{tpu_custom_call.1} parent=5 // pred_check_branch
        %305 = sbr.rel (%p302) target = $region56
      $region55: #{tpu_custom_call.1} parent=5 // pred_region
        %s306 = ssub.s32 %s19, 1
        // Predicated region
        $region57: #{tpu_custom_call.1} parent=55 // pred_check
          %p307 = pneg %p108
        $region58: #{tpu_custom_call.1} parent=55 // pred_check_branch
          %309 = sbr.rel (%p307) target = $region60
        $region59: #{tpu_custom_call.1} parent=55 // pred_region
          %310 = dma.done [#allocation3], 512
        $region60: #{tpu_custom_call.1} parent=55 // pred_fallthru
          _
        %p311 = scmp.lt.s32.totalorder %s24, 1
        %s312 = scalar_select %p311, %s24, 1
        %s313 = smul.addr %s312, 16
        %s314 = smul.addr %s313, 8
        %s315 = scalar_lea.vmem %s0, %s314
        %p316 = pneg %p45
        %p317 = pneg %p42
        %p318 = pneg %p66
        %p319 = pneg %p63
        %p320 = pneg %p87
        %p321 = pneg %p84
        %p322 = pneg %p108
        %p323 = pneg %p105
        %p324 = pneg %p129
        %p325 = pneg %p126
        %p326 = pneg %p150
        %p327 = pneg %p147
        %p328 = pneg %p171
        %p329 = pneg %p168
        %p330 = pneg %p192
        %p331 = pneg %p189
        %p332 = pneg %p213
        %p333 = pneg %p210
        %p334 = pneg %p239
        %p335 = pneg %p236
        %s336 = sand.u32 %s226, 1
        %s337 = scalar_lea.sflag [#allocation4], %s336
        %s338 = sand.u32 %s226, 1
        %s339 = smul.addr %s338, 8
        %s340 = scalar_lea.vmem [#allocation5], %s339
        %p341 = scmp.lt.s32.totalorder %s24, 1
        %s342 = scalar_select %p341, %s24, 1
        %s343 = smul.addr %s342, 16
        %s344 = smul.addr %s343, 8
        %s345 = scalar_lea.vmem %s0, %s344
        %v346 = vld [vmem:[%s345] sm:$0xff]
        %v347 = vld [vmem:[%s345 + $0x8] sm:$0xff]
        %v348 = vld [vmem:[%s345 + $0x10] sm:$0xff]
        %v349 = vld [vmem:[%s345 + $0x18] sm:$0xff]
        %v350 = vld [vmem:[%s345 + $0x20] sm:$0xff]
        %v351 = vld [vmem:[%s345 + $0x28] sm:$0xff]
        %v352 = vld [vmem:[%s345 + $0x30] sm:$0xff]
        %v353 = vld [vmem:[%s345 + $0x38] sm:$0xff]
        %v354 = vld [vmem:[%s345 + $0x40] sm:$0xff]
        %v355 = vld [vmem:[%s345 + $0x48] sm:$0xff]
        %v356 = vld [vmem:[%s345 + $0x50] sm:$0xff]
        %v357 = vld [vmem:[%s345 + $0x58] sm:$0xff]
        %v358 = vld [vmem:[%s345 + $0x60] sm:$0xff]
        %v359 = vld [vmem:[%s345 + $0x68] sm:$0xff]
        %v360 = vld [vmem:[%s345 + $0x70] sm:$0xff]
        %v361 = vld [vmem:[%s345 + $0x78] sm:$0xff]
        %v362 = vld [vmem:[#allocation2] sm:$0xff]
        %v363 = vld [vmem:[#allocation2 + $0x8] sm:$0xff]
        %v364 = vld [vmem:[#allocation2 + $0x10] sm:$0xff]
        %v365 = vld [vmem:[#allocation2 + $0x18] sm:$0xff]
        %vm366 = vcmask 523264
        %v368 = vsel %vm366, %v362, 0
        %v371 = vsel %vm366, %v363, 0
        %v374 = vsel %vm366, %v364, 0
        %v377 = vsel %vm366, %v365, 0
        %379 = vmatprep.subr.mxu0 %v347
        %380 = vmatpush1.msra.mxu0 %v346
        %381 = vmatprep.subr.mxu0 %v349
        %382 = vmatpush1.msra.mxu0 %v348
        %383 = vmatprep.subr.mxu0 %v351
        %384 = vmatpush1.msra.mxu0 %v350
        %385 = vmatprep.subr.mxu0 %v353
        %386 = vmatpush1.msra.mxu0 %v352
        %387 = vmatprep.subr.mxu0 %v355
        %388 = vmatpush1.msra.mxu0 %v354
        %389 = vmatprep.subr.mxu0 %v357
        %390 = vmatpush1.msra.mxu0 %v356
        %391 = vmatprep.subr.mxu0 %v359
        %392 = vmatpush1.msra.mxu0 %v358
        %393 = vmatprep.subr.mxu0 %v361
        %394 = vmatpush1.msra.mxu0 %v360
        %395 = vmatprep.subr.mxu0 0.0
        %396 = vmatpush1.msra.mxu0 0.0
        %397 = vmatprep.subr.mxu0 0.0
        %398 = vmatpush1.msra.mxu0 0.0
        %399 = vmatprep.subr.mxu0 0.0
        %400 = vmatpush1.msra.mxu0 0.0
        %401 = vmatprep.subr.mxu0 0.0
        %402 = vmatpush1.msra.mxu0 0.0
        %403 = vmatprep.subr.mxu0 0.0
        %404 = vmatpush1.msra.mxu0 0.0
        %405 = vmatprep.subr.mxu0 0.0
        %406 = vmatpush1.msra.mxu0 0.0
        %407 = vmatprep.subr.mxu0 0.0
        %408 = vmatpush1.msra.mxu0 0.0
        %409 = vmatprep.subr.mxu0 0.0
        %410 = vmatpush1.msra.mxu0 0.0
        %411 = vmatprep.subr.mxu0 0.0
        %412 = vmatpush1.msra.mxu0 0.0
        %413 = vmatprep.subr.mxu0 0.0
        %414 = vmatpush1.msra.mxu0 0.0
        %415 = vmatprep.subr.mxu0 0.0
        %416 = vmatpush1.msra.mxu0 0.0
        %417 = vmatprep.subr.mxu0 0.0
        %418 = vmatpush1.msra.mxu0 0.0
        %419 = vmatprep.subr.mxu0 0.0
        %420 = vmatpush1.msra.mxu0 0.0
        %421 = vmatprep.subr.mxu0 0.0
        %422 = vmatpush1.msra.mxu0 0.0
        %423 = vmatprep.subr.mxu0 0.0
        %424 = vmatpush1.msra.mxu0 0.0
        %425 = vmatprep.subr.mxu0 0.0
        %426 = vmatpush1.msra.mxu0 0.0
        %427 = vmatprep.subr.mxu0 0.0
        %428 = vmatpush1.msra.mxu0 0.0
        %429 = vmatprep.subr.mxu0 0.0
        %430 = vmatpush1.msra.mxu0 0.0
        %431 = vmatprep.subr.mxu0 0.0
        %432 = vmatpush1.msra.mxu0 0.0
        %433 = vmatprep.subr.mxu0 0.0
        %434 = vmatpush1.msra.mxu0 0.0
        %435 = vmatprep.subr.mxu0 0.0
        %436 = vmatpush1.msra.mxu0 0.0
        %437 = vmatprep.subr.mxu0 0.0
        %438 = vmatpush1.msra.mxu0 0.0
        %439 = vmatprep.subr.mxu0 0.0
        %440 = vmatpush1.msra.mxu0 0.0
        %441 = vmatprep.subr.mxu0 0.0
        %442 = vmatpush1.msra.mxu0 0.0
        %443 = vmatprep.mubr.f32.mxu0 0.0
        %444 = vmatmul.mubr.f32.gmra.mrb[0].mxu0 %v368
        %v445 = vpop.f32.mrb[0].mxu0
        %v446 = vadd.f32 0.0, %v445
        %v447 = vpop.f32.mrb[0].mxu0
        %v448 = vadd.f32 0.0, %v447
        %449 = vmatprep.mubr.f32.mxu0 0.0
        %450 = vmatmul.mubr.f32.gmra.mrb[0].mxu0 %v371
        %v451 = vpop.f32.mrb[0].mxu0
        %v452 = vadd.f32 0.0, %v451
        %v453 = vpop.f32.mrb[0].mxu0
        %v454 = vadd.f32 0.0, %v453
        %455 = vmatprep.mubr.f32.mxu0 0.0
        %456 = vmatmul.mubr.f32.gmra.mrb[0].mxu0 %v374
        %v457 = vpop.f32.mrb[0].mxu0
        %v458 = vadd.f32 0.0, %v457
        %v459 = vpop.f32.mrb[0].mxu0
        %v460 = vadd.f32 0.0, %v459
        %461 = vmatprep.mubr.f32.mxu0 0.0
        %462 = vmatmul.mubr.f32.gmra.mrb[0].mxu0 %v377
        %v463 = vpop.f32.mrb[0].mxu0
        %v464 = vadd.f32 0.0, %v463
        %v465 = vpop.f32.mrb[0].mxu0
        %v466 = vadd.f32 0.0, %v465
        %467 = vdwg.mxu0
        %v468 = vadd.f32 %v446, %v448
        %469 = vadd.xlane.f32.xlu0 %v468
        %v470 = vpop.xlane.xlu0 %469
        %v471 = vadd.f32 %v452, %v454
        %472 = vadd.xlane.f32.xlu0 %v471
        %v473 = vpop.xlane.xlu0 %472
        %v474 = vadd.f32 %v458, %v460
        %475 = vadd.xlane.f32.xlu0 %v474
        %v476 = vpop.xlane.xlu0 %475
        %v477 = vadd.f32 %v464, %v466
        %478 = vadd.xlane.f32.xlu0 %v477
        %v479 = vpop.xlane.xlu0 %478
        %v480 = vmul.f32 %v470, 0.001953125
        %v481 = vmul.f32 %v473, 0.001953125
        %v482 = vmul.f32 %v476, 0.001953125
        %v483 = vmul.f32 %v479, 0.001953125
        %v484 = vld [vmem:[%s4] sm:$0xff]
        %v485 = vld [vmem:[%s4 + $0x8] sm:$0xff]
        %v486 = vld [vmem:[%s4 + $0x10] sm:$0xff]
        %v487 = vld [vmem:[%s4 + $0x18] sm:$0xff]
        %v488 = vld [vmem:[%s4 + $0x20] sm:$0xff]
        %v489 = vld [vmem:[%s4 + $0x28] sm:$0xff]
        %v490 = vld [vmem:[%s4 + $0x30] sm:$0xff]
        %v491 = vld [vmem:[%s4 + $0x38] sm:$0xff]
        %vm492 = vcmask 261120
        %v494 = vsel %vm492, %v484, 0
        %v497 = vsel %vm492, %v485, 0
        %v500 = vsel %vm492, %v486, 0
        %v503 = vsel %vm492, %v487, 0
        %v506 = vsel %vm492, %v488, 0
        %v509 = vsel %vm492, %v489, 0
        %v512 = vsel %vm492, %v490, 0
        %v515 = vsel %vm492, %v491, 0
        %517 = vmatprep.subr.mxu0 %v480
        %518 = vmatpush1.msra.mxu0 %v480
        %519 = vmatprep.subr.mxu0 %v481
        %520 = vmatpush1.msra.mxu0 %v481
        %521 = vmatprep.subr.mxu0 %v482
        %522 = vmatpush1.msra.mxu0 %v482
        %523 = vmatprep.subr.mxu0 %v483
        %524 = vmatpush1.msra.mxu0 %v483
        %525 = vmatprep.subr.mxu0 0.0
        %526 = vmatpush1.msra.mxu0 0.0
        %527 = vmatprep.subr.mxu0 0.0
        %528 = vmatpush1.msra.mxu0 0.0
        %529 = vmatprep.subr.mxu0 0.0
        %530 = vmatpush1.msra.mxu0 0.0
        %531 = vmatprep.subr.mxu0 0.0
        %532 = vmatpush1.msra.mxu0 0.0
        %533 = vmatprep.subr.mxu0 0.0
        %534 = vmatpush1.msra.mxu0 0.0
        %535 = vmatprep.subr.mxu0 0.0
        %536 = vmatpush1.msra.mxu0 0.0
        %537 = vmatprep.subr.mxu0 0.0
        %538 = vmatpush1.msra.mxu0 0.0
        %539 = vmatprep.subr.mxu0 0.0
        %540 = vmatpush1.msra.mxu0 0.0
        %541 = vmatprep.subr.mxu0 0.0
        %542 = vmatpush1.msra.mxu0 0.0
        %543 = vmatprep.subr.mxu0 0.0
        %544 = vmatpush1.msra.mxu0 0.0
        %545 = vmatprep.subr.mxu0 0.0
        %546 = vmatpush1.msra.mxu0 0.0
        %547 = vmatprep.subr.mxu0 0.0
        %548 = vmatpush1.msra.mxu0 0.0
        %549 = vmatprep.subr.mxu0 0.0
        %550 = vmatpush1.msra.mxu0 0.0
        %551 = vmatprep.subr.mxu0 0.0
        %552 = vmatpush1.msra.mxu0 0.0
        %553 = vmatprep.subr.mxu0 0.0
        %554 = vmatpush1.msra.mxu0 0.0
        %555 = vmatprep.subr.mxu0 0.0
        %556 = vmatpush1.msra.mxu0 0.0
        %557 = vmatprep.subr.mxu0 0.0
        %558 = vmatpush1.msra.mxu0 0.0
        %559 = vmatprep.subr.mxu0 0.0
        %560 = vmatpush1.msra.mxu0 0.0
        %561 = vmatprep.subr.mxu0 0.0
        %562 = vmatpush1.msra.mxu0 0.0
        %563 = vmatprep.subr.mxu0 0.0
        %564 = vmatpush1.msra.mxu0 0.0
        %565 = vmatprep.subr.mxu0 0.0
        %566 = vmatpush1.msra.mxu0 0.0
        %567 = vmatprep.subr.mxu0 0.0
        %568 = vmatpush1.msra.mxu0 0.0
        %569 = vmatprep.subr.mxu0 0.0
        %570 = vmatpush1.msra.mxu0 0.0
        %571 = vmatprep.subr.mxu0 0.0
        %572 = vmatpush1.msra.mxu0 0.0
        %573 = vmatprep.subr.mxu0 0.0
        %574 = vmatpush1.msra.mxu0 0.0
        %575 = vmatprep.subr.mxu0 0.0
        %576 = vmatpush1.msra.mxu0 0.0
        %577 = vmatprep.subr.mxu0 0.0
        %578 = vmatpush1.msra.mxu0 0.0
        %579 = vmatprep.subr.mxu0 0.0
        %580 = vmatpush1.msra.mxu0 0.0
        %581 = vmatprep.mubr.f32.mxu0 0.0
        %582 = vmatmul.mubr.f32.gmra.mrb[0].mxu0 %v494
        %v583 = vpop.f32.mrb[0].mxu0
        %v584 = vadd.f32 0.0, %v583
        %v585 = vpop.f32.mrb[0].mxu0
        %v586 = vadd.f32 0.0, %v585
        %587 = vmatprep.mubr.f32.mxu0 0.0
        %588 = vmatmul.mubr.f32.gmra.mrb[0].mxu0 %v497
        %v589 = vpop.f32.mrb[0].mxu0
        %v590 = vadd.f32 0.0, %v589
        %v591 = vpop.f32.mrb[0].mxu0
        %v592 = vadd.f32 0.0, %v591
        %593 = vmatprep.mubr.f32.mxu0 0.0
        %594 = vmatmul.mubr.f32.gmra.mrb[0].mxu0 %v500
        %v595 = vpop.f32.mrb[0].mxu0
        %v596 = vadd.f32 0.0, %v595
        %v597 = vpop.f32.mrb[0].mxu0
        %v598 = vadd.f32 0.0, %v597
        %599 = vmatprep.mubr.f32.mxu0 0.0
        %600 = vmatmul.mubr.f32.gmra.mrb[0].mxu0 %v503
        %v601 = vpop.f32.mrb[0].mxu0
        %v602 = vadd.f32 0.0, %v601
        %v603 = vpop.f32.mrb[0].mxu0
        %v604 = vadd.f32 0.0, %v603
        %605 = vmatprep.mubr.f32.mxu0 0.0
        %606 = vmatmul.mubr.f32.gmra.mrb[0].mxu0 %v506
        %v607 = vpop.f32.mrb[0].mxu0
        %v608 = vadd.f32 0.0, %v607
        %v609 = vpop.f32.mrb[0].mxu0
        %v610 = vadd.f32 0.0, %v609
        %611 = vmatprep.mubr.f32.mxu0 0.0
        %612 = vmatmul.mubr.f32.gmra.mrb[0].mxu0 %v509
        %v613 = vpop.f32.mrb[0].mxu0
        %v614 = vadd.f32 0.0, %v613
        %v615 = vpop.f32.mrb[0].mxu0
        %v616 = vadd.f32 0.0, %v615
        %617 = vmatprep.mubr.f32.mxu0 0.0
        %618 = vmatmul.mubr.f32.gmra.mrb[0].mxu0 %v512
        %v619 = vpop.f32.mrb[0].mxu0
        %v620 = vadd.f32 0.0, %v619
        %v621 = vpop.f32.mrb[0].mxu0
        %v622 = vadd.f32 0.0, %v621
        %623 = vmatprep.mubr.f32.mxu0 0.0
        %624 = vmatmul.mubr.f32.gmra.mrb[0].mxu0 %v515
        %v625 = vpop.f32.mrb[0].mxu0
        %v626 = vadd.f32 0.0, %v625
        %v627 = vpop.f32.mrb[0].mxu0
        %v628 = vadd.f32 0.0, %v627
        %629 = vdwg.mxu0
        %v630 = vsub.f32 %v346, %v584
        %v631 = vsub.f32 %v347, %v586
        %v632 = vsub.f32 %v348, %v590
        %v633 = vsub.f32 %v349, %v592
        %v634 = vsub.f32 %v350, %v596
        %v635 = vsub.f32 %v351, %v598
        %v636 = vsub.f32 %v352, %v602
        %v637 = vsub.f32 %v353, %v604
        %v638 = vsub.f32 %v354, %v608
        %v639 = vsub.f32 %v355, %v610
        %v640 = vsub.f32 %v356, %v614
        %v641 = vsub.f32 %v357, %v616
        %v642 = vsub.f32 %v358, %v620
        %v643 = vsub.f32 %v359, %v622
        %v644 = vsub.f32 %v360, %v626
        %v645 = vsub.f32 %v361, %v628
        %v646 = vmul.f32 %v630, %v630
        %v647 = vmul.f32 %v631, %v631
        %v648 = vmul.f32 %v632, %v632
        %v649 = vmul.f32 %v633, %v633
        %v650 = vmul.f32 %v634, %v634
        %v651 = vmul.f32 %v635, %v635
        %v652 = vmul.f32 %v636, %v636
        %v653 = vmul.f32 %v637, %v637
        %v654 = vmul.f32 %v638, %v638
        %v655 = vmul.f32 %v639, %v639
        %v656 = vmul.f32 %v640, %v640
        %v657 = vmul.f32 %v641, %v641
        %v658 = vmul.f32 %v642, %v642
        %v659 = vmul.f32 %v643, %v643
        %v660 = vmul.f32 %v644, %v644
        %v661 = vmul.f32 %v645, %v645
        %662 = vmatprep.subr.mxu0 %v647
        %663 = vmatpush1.msra.mxu0 %v646
        %664 = vmatprep.subr.mxu0 %v649
        %665 = vmatpush1.msra.mxu0 %v648
        %666 = vmatprep.subr.mxu0 %v651
        %667 = vmatpush1.msra.mxu0 %v650
        %668 = vmatprep.subr.mxu0 %v653
        %669 = vmatpush1.msra.mxu0 %v652
        %670 = vmatprep.subr.mxu0 %v655
        %671 = vmatpush1.msra.mxu0 %v654
        %672 = vmatprep.subr.mxu0 %v657
        %673 = vmatpush1.msra.mxu0 %v656
        %674 = vmatprep.subr.mxu0 %v659
        %675 = vmatpush1.msra.mxu0 %v658
        %676 = vmatprep.subr.mxu0 %v661
        %677 = vmatpush1.msra.mxu0 %v660
        %678 = vmatprep.subr.mxu0 0.0
        %679 = vmatpush1.msra.mxu0 0.0
        %680 = vmatprep.subr.mxu0 0.0
        %681 = vmatpush1.msra.mxu0 0.0
        %682 = vmatprep.subr.mxu0 0.0
        %683 = vmatpush1.msra.mxu0 0.0
        %684 = vmatprep.subr.mxu0 0.0
        %685 = vmatpush1.msra.mxu0 0.0
        %686 = vmatprep.subr.mxu0 0.0
        %687 = vmatpush1.msra.mxu0 0.0
        %688 = vmatprep.subr.mxu0 0.0
        %689 = vmatpush1.msra.mxu0 0.0
        %690 = vmatprep.subr.mxu0 0.0
        %691 = vmatpush1.msra.mxu0 0.0
        %692 = vmatprep.subr.mxu0 0.0
        %693 = vmatpush1.msra.mxu0 0.0
        %694 = vmatprep.subr.mxu0 0.0
        %695 = vmatpush1.msra.mxu0 0.0
        %696 = vmatprep.subr.mxu0 0.0
        %697 = vmatpush1.msra.mxu0 0.0
        %698 = vmatprep.subr.mxu0 0.0
        %699 = vmatpush1.msra.mxu0 0.0
        %700 = vmatprep.subr.mxu0 0.0
        %701 = vmatpush1.msra.mxu0 0.0
        %702 = vmatprep.subr.mxu0 0.0
        %703 = vmatpush1.msra.mxu0 0.0
        %704 = vmatprep.subr.mxu0 0.0
        %705 = vmatpush1.msra.mxu0 0.0
        %706 = vmatprep.subr.mxu0 0.0
        %707 = vmatpush1.msra.mxu0 0.0
        %708 = vmatprep.subr.mxu0 0.0
        %709 = vmatpush1.msra.mxu0 0.0
        %710 = vmatprep.subr.mxu0 0.0
        %711 = vmatpush1.msra.mxu0 0.0
        %712 = vmatprep.subr.mxu0 0.0
        %713 = vmatpush1.msra.mxu0 0.0
        %714 = vmatprep.subr.mxu0 0.0
        %715 = vmatpush1.msra.mxu0 0.0
        %716 = vmatprep.subr.mxu0 0.0
        %717 = vmatpush1.msra.mxu0 0.0
        %718 = vmatprep.subr.mxu0 0.0
        %719 = vmatpush1.msra.mxu0 0.0
        %720 = vmatprep.subr.mxu0 0.0
        %721 = vmatpush1.msra.mxu0 0.0
        %722 = vmatprep.subr.mxu0 0.0
        %723 = vmatpush1.msra.mxu0 0.0
        %724 = vmatprep.subr.mxu0 0.0
        %725 = vmatpush1.msra.mxu0 0.0
        %726 = vmatprep.mubr.f32.mxu0 0.0
        %727 = vmatmul.mubr.f32.gmra.mrb[0].mxu0 %v368
        %v728 = vpop.f32.mrb[0].mxu0
        %v729 = vadd.f32 0.0, %v728
        %v730 = vpop.f32.mrb[0].mxu0
        %v731 = vadd.f32 0.0, %v730
        %732 = vmatprep.mubr.f32.mxu0 0.0
        %733 = vmatmul.mubr.f32.gmra.mrb[0].mxu0 %v371
        %v734 = vpop.f32.mrb[0].mxu0
        %v735 = vadd.f32 0.0, %v734
        %v736 = vpop.f32.mrb[0].mxu0
        %v737 = vadd.f32 0.0, %v736
        %738 = vmatprep.mubr.f32.mxu0 0.0
        %739 = vmatmul.mubr.f32.gmra.mrb[0].mxu0 %v374
        %v740 = vpop.f32.mrb[0].mxu0
        %v741 = vadd.f32 0.0, %v740
        %v742 = vpop.f32.mrb[0].mxu0
        %v743 = vadd.f32 0.0, %v742
        %744 = vmatprep.mubr.f32.mxu0 0.0
        %745 = vmatmul.mubr.f32.gmra.mrb[0].mxu0 %v377
        %v746 = vpop.f32.mrb[0].mxu0
        %v747 = vadd.f32 0.0, %v746
        %v748 = vpop.f32.mrb[0].mxu0
        %v749 = vadd.f32 0.0, %v748
        %750 = vdwg.mxu0
        %v751 = vadd.f32 %v729, %v731
        %752 = vadd.xlane.f32.xlu0 %v751
        %v753 = vpop.xlane.xlu0 %752
        %v754 = vadd.f32 %v735, %v737
        %755 = vadd.xlane.f32.xlu0 %v754
        %v756 = vpop.xlane.xlu0 %755
        %v757 = vadd.f32 %v741, %v743
        %758 = vadd.xlane.f32.xlu0 %v757
        %v759 = vpop.xlane.xlu0 %758
        %v760 = vadd.f32 %v747, %v749
        %761 = vadd.xlane.f32.xlu0 %v760
        %v762 = vpop.xlane.xlu0 %761
        %v763 = vmul.f32 %v753, 0.001953125
        %v764 = vmul.f32 %v756, 0.001953125
        %v765 = vmul.f32 %v759, 0.001953125
        %v766 = vmul.f32 %v762, 0.001953125
        %v767 = vadd.f32 %v763, 1e-05
        %v768 = vadd.f32 %v764, 1e-05
        %v769 = vadd.f32 %v765, 1e-05
        %v770 = vadd.f32 %v766, 1e-05
        %v771 = vrsqrt.pop %v767
        %v772 = vrsqrt.pop %v768
        %v773 = vrsqrt.pop %v769
        %v774 = vrsqrt.pop %v770
        %775 = vmatprep.subr.mxu0 %v771
        %776 = vmatpush1.msra.mxu0 %v771
        %777 = vmatprep.subr.mxu0 %v772
        %778 = vmatpush1.msra.mxu0 %v772
        %779 = vmatprep.subr.mxu0 %v773
        %780 = vmatpush1.msra.mxu0 %v773
        %781 = vmatprep.subr.mxu0 %v774
        %782 = vmatpush1.msra.mxu0 %v774
        %783 = vmatprep.subr.mxu0 0.0
        %784 = vmatpush1.msra.mxu0 0.0
        %785 = vmatprep.subr.mxu0 0.0
        %786 = vmatpush1.msra.mxu0 0.0
        %787 = vmatprep.subr.mxu0 0.0
        %788 = vmatpush1.msra.mxu0 0.0
        %789 = vmatprep.subr.mxu0 0.0
        %790 = vmatpush1.msra.mxu0 0.0
        %791 = vmatprep.subr.mxu0 0.0
        %792 = vmatpush1.msra.mxu0 0.0
        %793 = vmatprep.subr.mxu0 0.0
        %794 = vmatpush1.msra.mxu0 0.0
        %795 = vmatprep.subr.mxu0 0.0
        %796 = vmatpush1.msra.mxu0 0.0
        %797 = vmatprep.subr.mxu0 0.0
        %798 = vmatpush1.msra.mxu0 0.0
        %799 = vmatprep.subr.mxu0 0.0
        %800 = vmatpush1.msra.mxu0 0.0
        %801 = vmatprep.subr.mxu0 0.0
        %802 = vmatpush1.msra.mxu0 0.0
        %803 = vmatprep.subr.mxu0 0.0
        %804 = vmatpush1.msra.mxu0 0.0
        %805 = vmatprep.subr.mxu0 0.0
        %806 = vmatpush1.msra.mxu0 0.0
        %807 = vmatprep.subr.mxu0 0.0
        %808 = vmatpush1.msra.mxu0 0.0
        %809 = vmatprep.subr.mxu0 0.0
        %810 = vmatpush1.msra.mxu0 0.0
        %811 = vmatprep.subr.mxu0 0.0
        %812 = vmatpush1.msra.mxu0 0.0
        %813 = vmatprep.subr.mxu0 0.0
        %814 = vmatpush1.msra.mxu0 0.0
        %815 = vmatprep.subr.mxu0 0.0
        %816 = vmatpush1.msra.mxu0 0.0
        %817 = vmatprep.subr.mxu0 0.0
        %818 = vmatpush1.msra.mxu0 0.0
        %819 = vmatprep.subr.mxu0 0.0
        %820 = vmatpush1.msra.mxu0 0.0
        %821 = vmatprep.subr.mxu0 0.0
        %822 = vmatpush1.msra.mxu0 0.0
        %823 = vmatprep.subr.mxu0 0.0
        %824 = vmatpush1.msra.mxu0 0.0
        %825 = vmatprep.subr.mxu0 0.0
        %826 = vmatpush1.msra.mxu0 0.0
        %827 = vmatprep.subr.mxu0 0.0
        %828 = vmatpush1.msra.mxu0 0.0
        %829 = vmatprep.subr.mxu0 0.0
        %830 = vmatpush1.msra.mxu0 0.0
        %831 = vmatprep.subr.mxu0 0.0
        %832 = vmatpush1.msra.mxu0 0.0
        %833 = vmatprep.subr.mxu0 0.0
        %834 = vmatpush1.msra.mxu0 0.0
        %835 = vmatprep.subr.mxu0 0.0
        %836 = vmatpush1.msra.mxu0 0.0
        %837 = vmatprep.subr.mxu0 0.0
        %838 = vmatpush1.msra.mxu0 0.0
        %839 = vmatprep.mubr.f32.mxu0 0.0
        %840 = vmatmul.mubr.f32.gmra.mrb[0].mxu0 %v494
        %v841 = vpop.f32.mrb[0].mxu0
        %v842 = vadd.f32 0.0, %v841
        %v843 = vpop.f32.mrb[0].mxu0
        %v844 = vadd.f32 0.0, %v843
        %845 = vmatprep.mubr.f32.mxu0 0.0
        %846 = vmatmul.mubr.f32.gmra.mrb[0].mxu0 %v497
        %v847 = vpop.f32.mrb[0].mxu0
        %v848 = vadd.f32 0.0, %v847
        %v849 = vpop.f32.mrb[0].mxu0
        %v850 = vadd.f32 0.0, %v849
        %851 = vmatprep.mubr.f32.mxu0 0.0
        %852 = vmatmul.mubr.f32.gmra.mrb[0].mxu0 %v500
        %v853 = vpop.f32.mrb[0].mxu0
        %v854 = vadd.f32 0.0, %v853
        %v855 = vpop.f32.mrb[0].mxu0
        %v856 = vadd.f32 0.0, %v855
        %857 = vmatprep.mubr.f32.mxu0 0.0
        %858 = vmatmul.mubr.f32.gmra.mrb[0].mxu0 %v503
        %v859 = vpop.f32.mrb[0].mxu0
        %v860 = vadd.f32 0.0, %v859
        %v861 = vpop.f32.mrb[0].mxu0
        %v862 = vadd.f32 0.0, %v861
        %863 = vmatprep.mubr.f32.mxu0 0.0
        %864 = vmatmul.mubr.f32.gmra.mrb[0].mxu0 %v506
        %v865 = vpop.f32.mrb[0].mxu0
        %v866 = vadd.f32 0.0, %v865
        %v867 = vpop.f32.mrb[0].mxu0
        %v868 = vadd.f32 0.0, %v867
        %869 = vmatprep.mubr.f32.mxu0 0.0
        %870 = vmatmul.mubr.f32.gmra.mrb[0].mxu0 %v509
        %v871 = vpop.f32.mrb[0].mxu0
        %v872 = vadd.f32 0.0, %v871
        %v873 = vpop.f32.mrb[0].mxu0
        %v874 = vadd.f32 0.0, %v873
        %875 = vmatprep.mubr.f32.mxu0 0.0
        %876 = vmatmul.mubr.f32.gmra.mrb[0].mxu0 %v512
        %v877 = vpop.f32.mrb[0].mxu0
        %v878 = vadd.f32 0.0, %v877
        %v879 = vpop.f32.mrb[0].mxu0
        %v880 = vadd.f32 0.0, %v879
        %881 = vmatprep.mubr.f32.mxu0 0.0
        %882 = vmatmul.mubr.f32.gmra.mrb[0].mxu0 %v515
        %v883 = vpop.f32.mrb[0].mxu0
        %v884 = vadd.f32 0.0, %v883
        %v885 = vpop.f32.mrb[0].mxu0
        %v886 = vadd.f32 0.0, %v885
        %887 = vdwg.mxu0
        %v888 = vmul.f32 %v630, %v842
        %v889 = vmul.f32 %v631, %v844
        %v890 = vmul.f32 %v632, %v848
        %v891 = vmul.f32 %v633, %v850
        %v892 = vmul.f32 %v634, %v854
        %v893 = vmul.f32 %v635, %v856
        %v894 = vmul.f32 %v636, %v860
        %v895 = vmul.f32 %v637, %v862
        %v896 = vmul.f32 %v638, %v866
        %v897 = vmul.f32 %v639, %v868
        %v898 = vmul.f32 %v640, %v872
        %v899 = vmul.f32 %v641, %v874
        %v900 = vmul.f32 %v642, %v878
        %v901 = vmul.f32 %v643, %v880
        %v902 = vmul.f32 %v644, %v884
        %v903 = vmul.f32 %v645, %v886
        %v904 = vld [vmem:[%s1] sm:$0xff]
        %v905 = vld [vmem:[%s1 + $0x8] sm:$0xff]
        %v906 = vld [vmem:[%s1 + $0x10] sm:$0xff]
        %v907 = vld [vmem:[%s1 + $0x18] sm:$0xff]
        %v908 = vld [vmem:[%s1 + $0x20] sm:$0xff]
        %v909 = vld [vmem:[%s1 + $0x28] sm:$0xff]
        %v910 = vld [vmem:[%s1 + $0x30] sm:$0xff]
        %v911 = vld [vmem:[%s1 + $0x38] sm:$0xff]
        %913 = vset.pattern.permute.xlu0 0
        %914 = vperm.xlu0 %913, %v904
        %v915 = vpop.permute.xlu0 %914
        %918 = vset.pattern.permute.xlu0 0
        %919 = vperm.xlu0 %918, %v905
        %v920 = vpop.permute.xlu0 %919
        %923 = vset.pattern.permute.xlu0 0
        %924 = vperm.xlu0 %923, %v906
        %v925 = vpop.permute.xlu0 %924
        %928 = vset.pattern.permute.xlu0 0
        %929 = vperm.xlu0 %928, %v907
        %v930 = vpop.permute.xlu0 %929
        %933 = vset.pattern.permute.xlu0 0
        %934 = vperm.xlu0 %933, %v908
        %v935 = vpop.permute.xlu0 %934
        %938 = vset.pattern.permute.xlu0 0
        %939 = vperm.xlu0 %938, %v909
        %v940 = vpop.permute.xlu0 %939
        %943 = vset.pattern.permute.xlu0 0
        %944 = vperm.xlu0 %943, %v910
        %v945 = vpop.permute.xlu0 %944
        %948 = vset.pattern.permute.xlu0 0
        %949 = vperm.xlu0 %948, %v911
        %v950 = vpop.permute.xlu0 %949
        %v952 = vmul.f32 %v888, %v915
        %v953 = vmul.f32 %v889, %v915
        %v954 = vmul.f32 %v890, %v920
        %v955 = vmul.f32 %v891, %v920
        %v956 = vmul.f32 %v892, %v925
        %v957 = vmul.f32 %v893, %v925
        %v958 = vmul.f32 %v894, %v930
        %v959 = vmul.f32 %v895, %v930
        %v960 = vmul.f32 %v896, %v935
        %v961 = vmul.f32 %v897, %v935
        %v962 = vmul.f32 %v898, %v940
        %v963 = vmul.f32 %v899, %v940
        %v964 = vmul.f32 %v900, %v945
        %v965 = vmul.f32 %v901, %v945
        %v966 = vmul.f32 %v902, %v950
        %v967 = vmul.f32 %v903, %v950
        %v968 = vld [vmem:[%s2] sm:$0xff]
        %v969 = vld [vmem:[%s2 + $0x8] sm:$0xff]
        %v970 = vld [vmem:[%s2 + $0x10] sm:$0xff]
        %v971 = vld [vmem:[%s2 + $0x18] sm:$0xff]
        %v972 = vld [vmem:[%s2 + $0x20] sm:$0xff]
        %v973 = vld [vmem:[%s2 + $0x28] sm:$0xff]
        %v974 = vld [vmem:[%s2 + $0x30] sm:$0xff]
        %v975 = vld [vmem:[%s2 + $0x38] sm:$0xff]
        %977 = vset.pattern.permute.xlu0 0
        %978 = vperm.xlu0 %977, %v968
        %v979 = vpop.permute.xlu0 %978
        %982 = vset.pattern.permute.xlu0 0
        %983 = vperm.xlu0 %982, %v969
        %v984 = vpop.permute.xlu0 %983
        %987 = vset.pattern.permute.xlu0 0
        %988 = vperm.xlu0 %987, %v970
        %v989 = vpop.permute.xlu0 %988
        %992 = vset.pattern.permute.xlu0 0
        %993 = vperm.xlu0 %992, %v971
        %v994 = vpop.permute.xlu0 %993
        %997 = vset.pattern.permute.xlu0 0
        %998 = vperm.xlu0 %997, %v972
        %v999 = vpop.permute.xlu0 %998
        %1002 = vset.pattern.permute.xlu0 0
        %1003 = vperm.xlu0 %1002, %v973
        %v1004 = vpop.permute.xlu0 %1003
        %1007 = vset.pattern.permute.xlu0 0
        %1008 = vperm.xlu0 %1007, %v974
        %v1009 = vpop.permute.xlu0 %1008
        %1012 = vset.pattern.permute.xlu0 0
        %1013 = vperm.xlu0 %1012, %v975
        %v1014 = vpop.permute.xlu0 %1013
        %v1016 = vadd.f32 %v952, %v979
        %v1017 = vadd.f32 %v953, %v979
        %v1018 = vadd.f32 %v954, %v984
        %v1019 = vadd.f32 %v955, %v984
        %v1020 = vadd.f32 %v956, %v989
        %v1021 = vadd.f32 %v957, %v989
        %v1022 = vadd.f32 %v958, %v994
        %v1023 = vadd.f32 %v959, %v994
        %v1024 = vadd.f32 %v960, %v999
        %v1025 = vadd.f32 %v961, %v999
        %v1026 = vadd.f32 %v962, %v1004
        %v1027 = vadd.f32 %v963, %v1004
        %v1028 = vadd.f32 %v964, %v1009
        %v1029 = vadd.f32 %v965, %v1009
        %v1030 = vadd.f32 %v966, %v1014
        %v1031 = vadd.f32 %v967, %v1014
        %v1032 = vxor.u32 %v1016, 2147483648
        %v1033 = vxor.u32 %v1017, 2147483648
        %v1034 = vxor.u32 %v1018, 2147483648
        %v1035 = vxor.u32 %v1019, 2147483648
        %v1036 = vxor.u32 %v1020, 2147483648
        %v1037 = vxor.u32 %v1021, 2147483648
        %v1038 = vxor.u32 %v1022, 2147483648
        %v1039 = vxor.u32 %v1023, 2147483648
        %v1040 = vxor.u32 %v1024, 2147483648
        %v1041 = vxor.u32 %v1025, 2147483648
        %v1042 = vxor.u32 %v1026, 2147483648
        %v1043 = vxor.u32 %v1027, 2147483648
        %v1044 = vxor.u32 %v1028, 2147483648
        %v1045 = vxor.u32 %v1029, 2147483648
        %v1046 = vxor.u32 %v1030, 2147483648
        %v1047 = vxor.u32 %v1031, 2147483648
        %v1048 = vmul.f32 %v1032, 1.442695
        %v1049 = vpow.pop %v1048
        %v1050 = vmul.f32 %v1033, 1.442695
        %v1051 = vpow.pop %v1050
        %v1052 = vmul.f32 %v1034, 1.442695
        %v1053 = vpow.pop %v1052
        %v1054 = vmul.f32 %v1035, 1.442695
        %v1055 = vpow.pop %v1054
        %v1056 = vmul.f32 %v1036, 1.442695
        %v1057 = vpow.pop %v1056
        %v1058 = vmul.f32 %v1037, 1.442695
        %v1059 = vpow.pop %v1058
        %v1060 = vmul.f32 %v1038, 1.442695
        %v1061 = vpow.pop %v1060
        %v1062 = vmul.f32 %v1039, 1.442695
        %v1063 = vpow.pop %v1062
        %v1064 = vmul.f32 %v1040, 1.442695
        %v1065 = vpow.pop %v1064
        %v1066 = vmul.f32 %v1041, 1.442695
        %v1067 = vpow.pop %v1066
        %v1068 = vmul.f32 %v1042, 1.442695
        %v1069 = vpow.pop %v1068
        %v1070 = vmul.f32 %v1043, 1.442695
        %v1071 = vpow.pop %v1070
        %v1072 = vmul.f32 %v1044, 1.442695
        %v1073 = vpow.pop %v1072
        %v1074 = vmul.f32 %v1045, 1.442695
        %v1075 = vpow.pop %v1074
        %v1076 = vmul.f32 %v1046, 1.442695
        %v1077 = vpow.pop %v1076
        %v1078 = vmul.f32 %v1047, 1.442695
        %v1079 = vpow.pop %v1078
        %v1080 = vadd.f32 %v1049, 1.0
        %v1081 = vadd.f32 %v1051, 1.0
        %v1082 = vadd.f32 %v1053, 1.0
        %v1083 = vadd.f32 %v1055, 1.0
        %v1084 = vadd.f32 %v1057, 1.0
        %v1085 = vadd.f32 %v1059, 1.0
        %v1086 = vadd.f32 %v1061, 1.0
        %v1087 = vadd.f32 %v1063, 1.0
        %v1088 = vadd.f32 %v1065, 1.0
        %v1089 = vadd.f32 %v1067, 1.0
        %v1090 = vadd.f32 %v1069, 1.0
        %v1091 = vadd.f32 %v1071, 1.0
        %v1092 = vadd.f32 %v1073, 1.0
        %v1093 = vadd.f32 %v1075, 1.0
        %v1094 = vadd.f32 %v1077, 1.0
        %v1095 = vadd.f32 %v1079, 1.0
        %v1096 = vrcp.pop %v1080
        %v1097 = vmul.f32 1.0, %v1096
        %v1098 = vrcp.pop %v1081
        %v1099 = vmul.f32 1.0, %v1098
        %v1100 = vrcp.pop %v1082
        %v1101 = vmul.f32 1.0, %v1100
        %v1102 = vrcp.pop %v1083
        %v1103 = vmul.f32 1.0, %v1102
        %v1104 = vrcp.pop %v1084
        %v1105 = vmul.f32 1.0, %v1104
        %v1106 = vrcp.pop %v1085
        %v1107 = vmul.f32 1.0, %v1106
        %v1108 = vrcp.pop %v1086
        %v1109 = vmul.f32 1.0, %v1108
        %v1110 = vrcp.pop %v1087
        %v1111 = vmul.f32 1.0, %v1110
        %v1112 = vrcp.pop %v1088
        %v1113 = vmul.f32 1.0, %v1112
        %v1114 = vrcp.pop %v1089
        %v1115 = vmul.f32 1.0, %v1114
        %v1116 = vrcp.pop %v1090
        %v1117 = vmul.f32 1.0, %v1116
        %v1118 = vrcp.pop %v1091
        %v1119 = vmul.f32 1.0, %v1118
        %v1120 = vrcp.pop %v1092
        %v1121 = vmul.f32 1.0, %v1120
        %v1122 = vrcp.pop %v1093
        %v1123 = vmul.f32 1.0, %v1122
        %v1124 = vrcp.pop %v1094
        %v1125 = vmul.f32 1.0, %v1124
        %v1126 = vrcp.pop %v1095
        %v1127 = vmul.f32 1.0, %v1126
        %v1128 = vmul.f32 %v1016, %v1097
        %v1129 = vmul.f32 %v1017, %v1099
        %v1130 = vmul.f32 %v1018, %v1101
        %v1131 = vmul.f32 %v1019, %v1103
        %v1132 = vmul.f32 %v1020, %v1105
        %v1133 = vmul.f32 %v1021, %v1107
        %v1134 = vmul.f32 %v1022, %v1109
        %v1135 = vmul.f32 %v1023, %v1111
        %v1136 = vmul.f32 %v1024, %v1113
        %v1137 = vmul.f32 %v1025, %v1115
        %v1138 = vmul.f32 %v1026, %v1117
        %v1139 = vmul.f32 %v1027, %v1119
        %v1140 = vmul.f32 %v1028, %v1121
        %v1141 = vmul.f32 %v1029, %v1123
        %v1142 = vmul.f32 %v1030, %v1125
        %v1143 = vmul.f32 %v1031, %v1127
        %v1144 = vld [vmem:[%s5] sm:$0xff]
        %v1145 = vld [vmem:[%s5 + $0x8] sm:$0xff]
        %v1146 = vld [vmem:[%s5 + $0x10] sm:$0xff]
        %v1147 = vld [vmem:[%s5 + $0x18] sm:$0xff]
        %v1148 = vld [vmem:[%s5 + $0x20] sm:$0xff]
        %v1149 = vld [vmem:[%s5 + $0x28] sm:$0xff]
        %v1150 = vld [vmem:[%s5 + $0x30] sm:$0xff]
        %v1151 = vld [vmem:[%s5 + $0x38] sm:$0xff]
        %v1152 = vld [vmem:[%s5 + $0x40] sm:$0xff]
        %v1154 = vsel %vm366, %v1144, 0
        %v1157 = vsel %vm366, %v1145, 0
        %v1160 = vsel %vm366, %v1146, 0
        %v1163 = vsel %vm366, %v1147, 0
        %v1166 = vsel %vm366, %v1148, 0
        %v1169 = vsel %vm366, %v1149, 0
        %v1172 = vsel %vm366, %v1150, 0
        %v1175 = vsel %vm366, %v1151, 0
        %v1178 = vsel %vm366, %v1152, 0
        %1180 = vmatprep.subr.mxu0 %v1129
        %1181 = vmatpush1.msra.mxu0 %v1128
        %1182 = vmatprep.subr.mxu0 %v1131
        %1183 = vmatpush1.msra.mxu0 %v1130
        %1184 = vmatprep.subr.mxu0 %v1133
        %1185 = vmatpush1.msra.mxu0 %v1132
        %1186 = vmatprep.subr.mxu0 %v1135
        %1187 = vmatpush1.msra.mxu0 %v1134
        %1188 = vmatprep.subr.mxu0 %v1137
        %1189 = vmatpush1.msra.mxu0 %v1136
        %1190 = vmatprep.subr.mxu0 %v1139
        %1191 = vmatpush1.msra.mxu0 %v1138
        %1192 = vmatprep.subr.mxu0 %v1141
        %1193 = vmatpush1.msra.mxu0 %v1140
        %1194 = vmatprep.subr.mxu0 %v1143
        %1195 = vmatpush1.msra.mxu0 %v1142
        %1196 = vmatprep.subr.mxu0 0.0
        %1197 = vmatpush1.msra.mxu0 0.0
        %1198 = vmatprep.subr.mxu0 0.0
        %1199 = vmatpush1.msra.mxu0 0.0
        %1200 = vmatprep.subr.mxu0 0.0
        %1201 = vmatpush1.msra.mxu0 0.0
        %1202 = vmatprep.subr.mxu0 0.0
        %1203 = vmatpush1.msra.mxu0 0.0
        %1204 = vmatprep.subr.mxu0 0.0
        %1205 = vmatpush1.msra.mxu0 0.0
        %1206 = vmatprep.subr.mxu0 0.0
        %1207 = vmatpush1.msra.mxu0 0.0
        %1208 = vmatprep.subr.mxu0 0.0
        %1209 = vmatpush1.msra.mxu0 0.0
        %1210 = vmatprep.subr.mxu0 0.0
        %1211 = vmatpush1.msra.mxu0 0.0
        %1212 = vmatprep.subr.mxu0 0.0
        %1213 = vmatpush1.msra.mxu0 0.0
        %1214 = vmatprep.subr.mxu0 0.0
        %1215 = vmatpush1.msra.mxu0 0.0
        %1216 = vmatprep.subr.mxu0 0.0
        %1217 = vmatpush1.msra.mxu0 0.0
        %1218 = vmatprep.subr.mxu0 0.0
        %1219 = vmatpush1.msra.mxu0 0.0
        %1220 = vmatprep.subr.mxu0 0.0
        %1221 = vmatpush1.msra.mxu0 0.0
        %1222 = vmatprep.subr.mxu0 0.0
        %1223 = vmatpush1.msra.mxu0 0.0
        %1224 = vmatprep.subr.mxu0 0.0
        %1225 = vmatpush1.msra.mxu0 0.0
        %1226 = vmatprep.subr.mxu0 0.0
        %1227 = vmatpush1.msra.mxu0 0.0
        %1228 = vmatprep.subr.mxu0 0.0
        %1229 = vmatpush1.msra.mxu0 0.0
        %1230 = vmatprep.subr.mxu0 0.0
        %1231 = vmatpush1.msra.mxu0 0.0
        %1232 = vmatprep.subr.mxu0 0.0
        %1233 = vmatpush1.msra.mxu0 0.0
        %1234 = vmatprep.subr.mxu0 0.0
        %1235 = vmatpush1.msra.mxu0 0.0
        %1236 = vmatprep.subr.mxu0 0.0
        %1237 = vmatpush1.msra.mxu0 0.0
        %1238 = vmatprep.subr.mxu0 0.0
        %1239 = vmatpush1.msra.mxu0 0.0
        %1240 = vmatprep.subr.mxu0 0.0
        %1241 = vmatpush1.msra.mxu0 0.0
        %1242 = vmatprep.subr.mxu0 0.0
        %1243 = vmatpush1.msra.mxu0 0.0
        %1244 = vmatprep.mubr.f32.mxu0 0.0
        %1245 = vmatmul.mubr.f32.gmra.mrb[0].mxu0 %v1154
        %v1246 = vpop.f32.mrb[0].mxu0
        %v1247 = vadd.f32 0.0, %v1246
        %v1248 = vpop.f32.mrb[0].mxu0
        %v1249 = vadd.f32 0.0, %v1248
        %1250 = vmatprep.mubr.f32.mxu0 0.0
        %1251 = vmatmul.mubr.f32.gmra.mrb[0].mxu0 %v1157
        %v1252 = vpop.f32.mrb[0].mxu0
        %v1253 = vadd.f32 0.0, %v1252
        %v1254 = vpop.f32.mrb[0].mxu0
        %v1255 = vadd.f32 0.0, %v1254
        %1256 = vmatprep.mubr.f32.mxu0 0.0
        %1257 = vmatmul.mubr.f32.gmra.mrb[0].mxu0 %v1160
        %v1258 = vpop.f32.mrb[0].mxu0
        %v1259 = vadd.f32 0.0, %v1258
        %v1260 = vpop.f32.mrb[0].mxu0
        %v1261 = vadd.f32 0.0, %v1260
        %1262 = vmatprep.mubr.f32.mxu0 0.0
        %1263 = vmatmul.mubr.f32.gmra.mrb[0].mxu0 %v1163
        %v1264 = vpop.f32.mrb[0].mxu0
        %v1265 = vadd.f32 0.0, %v1264
        %v1266 = vpop.f32.mrb[0].mxu0
        %v1267 = vadd.f32 0.0, %v1266
        %1268 = vmatprep.mubr.f32.mxu0 0.0
        %1269 = vmatmul.mubr.f32.gmra.mrb[0].mxu0 %v1166
        %v1270 = vpop.f32.mrb[0].mxu0
        %v1271 = vadd.f32 0.0, %v1270
        %v1272 = vpop.f32.mrb[0].mxu0
        %v1273 = vadd.f32 0.0, %v1272
        %1274 = vmatprep.mubr.f32.mxu0 0.0
        %1275 = vmatmul.mubr.f32.gmra.mrb[0].mxu0 %v1169
        %v1276 = vpop.f32.mrb[0].mxu0
        %v1277 = vadd.f32 0.0, %v1276
        %v1278 = vpop.f32.mrb[0].mxu0
        %v1279 = vadd.f32 0.0, %v1278
        %1280 = vmatprep.mubr.f32.mxu0 0.0
        %1281 = vmatmul.mubr.f32.gmra.mrb[0].mxu0 %v1172
        %v1282 = vpop.f32.mrb[0].mxu0
        %v1283 = vadd.f32 0.0, %v1282
        %v1284 = vpop.f32.mrb[0].mxu0
        %v1285 = vadd.f32 0.0, %v1284
        %1286 = vmatprep.mubr.f32.mxu0 0.0
        %1287 = vmatmul.mubr.f32.gmra.mrb[0].mxu0 %v1175
        %v1288 = vpop.f32.mrb[0].mxu0
        %v1289 = vadd.f32 0.0, %v1288
        %v1290 = vpop.f32.mrb[0].mxu0
        %v1291 = vadd.f32 0.0, %v1290
        %1292 = vmatprep.mubr.f32.mxu0 0.0
        %1293 = vmatmul.mubr.f32.gmra.mrb[0].mxu0 %v1178
        %v1294 = vpop.f32.mrb[0].mxu0
        %v1295 = vadd.f32 0.0, %v1294
        %v1296 = vpop.f32.mrb[0].mxu0
        %v1297 = vadd.f32 0.0, %v1296
        %1298 = vdwg.mxu0
        %v1299 = vld [vmem:[%s7] sm:$0x3]
        %v1300 = vld [vmem:[%s8] sm:$0x3]
        %1301 = vrot.lane.b32.xlu0 %v1247, 17
        %v1302 = vpop.permute.xlu0 %1301
        %1303 = vrot.lane.b32.xlu0 %v1249, 17
        %v1304 = vpop.permute.xlu0 %1303
        %v1305 = vlaneseq
        %v1306 = vand.u32 %v1305, 127
        %vm1307 = vcmp.lt.s32.totalorder %v1306, 17
        %v1308 = vsel %vm1307, %v1302, %v1304
        %v1309 = vsel %vm1307, %v1304, %v1302
        %vm1310 = vcmp.ge.s32.totalorder %v1299, 1
        %vm1311 = vcmp.ge.s32.totalorder %v1300, 1
        %vm1312 = vmand %vm1310, %vm1311
        %v1313 = vsel %vm1312, 1, 0
        %v1314 = vlaneseq
        %v1315 = vshrl.u32 %v1314, 7
        %v1316 = vsub.s32 0, %v1315
        %v1317 = vrot.slane %v1313, %v1316
        %v1318 = vlaneseq
        %v1319 = vshrl.u32 %v1318, 7
        %v1320 = vsub.s32 1, %v1319
        %v1321 = vrot.slane %v1313, %v1320
        %vm1322 = vcmp.eq.s32.totalorder %v1317, 1
        %vm1323 = vcmp.eq.s32.totalorder %v1321, 1
        %v1324 = vsel %vm1322, %v1309, 0.0
        %v1325 = vsel %vm1323, %v1308, 0.0
        %1326 = vrot.lane.b32.xlu0 %v1253, 16
        %v1327 = vpop.permute.xlu0 %1326
        %1328 = vrot.lane.b32.xlu0 %v1255, 16
        %v1329 = vpop.permute.xlu0 %1328
        %vm1330 = vcmp.lt.s32.totalorder %v1306, 16
        %v1331 = vsel %vm1330, %v1327, %v1329
        %v1332 = vsel %vm1330, %v1329, %v1327
        %v1333 = vsel %vm1310, 1, 0
        %v1334 = vlaneseq
        %v1335 = vshrl.u32 %v1334, 7
        %v1336 = vsub.s32 0, %v1335
        %v1337 = vrot.slane %v1333, %v1336
        %v1338 = vlaneseq
        %v1339 = vshrl.u32 %v1338, 7
        %v1340 = vsub.s32 1, %v1339
        %v1341 = vrot.slane %v1333, %v1340
        %vm1342 = vcmp.eq.s32.totalorder %v1337, 1
        %vm1343 = vcmp.eq.s32.totalorder %v1341, 1
        %v1344 = vsel %vm1342, %v1332, 0.0
        %v1345 = vsel %vm1343, %v1331, 0.0
        %v1346 = vadd.f32 %v1324, %v1344
        %v1347 = vadd.f32 %v1325, %v1345
        %1348 = vrot.lane.b32.xlu0 %v1259, 15
        %v1349 = vpop.permute.xlu0 %1348
        %1350 = vrot.lane.b32.xlu0 %v1261, 15
        %v1351 = vpop.permute.xlu0 %1350
        %vm1352 = vcmp.lt.s32.totalorder %v1306, 15
        %v1353 = vsel %vm1352, %v1349, %v1351
        %v1354 = vsel %vm1352, %v1351, %v1349
        %vm1355 = vcmp.lt.s32.totalorder %v1300, 15
        %vm1356 = vmand %vm1310, %vm1355
        %v1357 = vsel %vm1356, 1, 0
        %v1358 = vlaneseq
        %v1359 = vshrl.u32 %v1358, 7
        %v1360 = vsub.s32 0, %v1359
        %v1361 = vrot.slane %v1357, %v1360
        %v1362 = vlaneseq
        %v1363 = vshrl.u32 %v1362, 7
        %v1364 = vsub.s32 1, %v1363
        %v1365 = vrot.slane %v1357, %v1364
        %vm1366 = vcmp.eq.s32.totalorder %v1361, 1
        %vm1367 = vcmp.eq.s32.totalorder %v1365, 1
        %v1368 = vsel %vm1366, %v1354, 0.0
        %v1369 = vsel %vm1367, %v1353, 0.0
        %v1370 = vadd.f32 %v1346, %v1368
        %v1371 = vadd.f32 %v1347, %v1369
        %1372 = vrot.lane.b32.xlu0 %v1265, 1
        %v1373 = vpop.permute.xlu0 %1372
        %1374 = vrot.lane.b32.xlu0 %v1267, 1
        %v1375 = vpop.permute.xlu0 %1374
        %vm1376 = vcmp.lt.s32.totalorder %v1306, 1
        %v1377 = vsel %vm1376, %v1373, %v1375
        %v1378 = vsel %vm1376, %v1375, %v1373
        %v1379 = vsel %vm1311, 1, 0
        %v1380 = vlaneseq
        %v1381 = vshrl.u32 %v1380, 7
        %v1382 = vsub.s32 0, %v1381
        %v1383 = vrot.slane %v1379, %v1382
        %v1384 = vlaneseq
        %v1385 = vshrl.u32 %v1384, 7
        %v1386 = vsub.s32 1, %v1385
        %v1387 = vrot.slane %v1379, %v1386
        %vm1388 = vcmp.eq.s32.totalorder %v1383, 1
        %vm1389 = vcmp.eq.s32.totalorder %v1387, 1
        %v1390 = vsel %vm1388, %v1378, 0.0
        %v1391 = vsel %vm1389, %v1377, 0.0
        %v1392 = vadd.f32 %v1370, %v1390
        %v1393 = vadd.f32 %v1371, %v1391
        %v1394 = vadd.f32 %v1392, %v1271
        %v1395 = vadd.f32 %v1393, %v1273
        %1396 = vrot.lane.b32.xlu0 %v1277, 127
        %v1397 = vpop.permute.xlu0 %1396
        %1398 = vrot.lane.b32.xlu0 %v1279, 127
        %v1399 = vpop.permute.xlu0 %1398
        %vm1400 = vcmp.lt.s32.totalorder %v1306, 127
        %v1401 = vsel %vm1400, %v1397, %v1399
        %v1402 = vsel %vm1400, %v1399, %v1397
        %v1403 = vsel %vm1355, 1, 0
        %v1404 = vlaneseq
        %v1405 = vshrl.u32 %v1404, 7
        %v1406 = vsub.s32 0, %v1405
        %v1407 = vrot.slane %v1403, %v1406
        %v1408 = vlaneseq
        %v1409 = vshrl.u32 %v1408, 7
        %v1410 = vsub.s32 1, %v1409
        %v1411 = vrot.slane %v1403, %v1410
        %vm1412 = vcmp.eq.s32.totalorder %v1407, 1
        %vm1413 = vcmp.eq.s32.totalorder %v1411, 1
        %v1414 = vsel %vm1412, %v1401, 0.0
        %v1415 = vsel %vm1413, %v1402, 0.0
        %v1416 = vadd.f32 %v1394, %v1414
        %v1417 = vadd.f32 %v1395, %v1415
        %1418 = vrot.lane.b32.xlu0 %v1283, 113
        %v1419 = vpop.permute.xlu0 %1418
        %1420 = vrot.lane.b32.xlu0 %v1285, 113
        %v1421 = vpop.permute.xlu0 %1420
        %vm1422 = vcmp.lt.s32.totalorder %v1306, 113
        %v1423 = vsel %vm1422, %v1419, %v1421
        %v1424 = vsel %vm1422, %v1421, %v1419
        %vm1425 = vcmp.lt.s32.totalorder %v1299, 15
        %vm1426 = vmand %vm1425, %vm1311
        %v1427 = vsel %vm1426, 1, 0
        %v1428 = vlaneseq
        %v1429 = vshrl.u32 %v1428, 7
        %v1430 = vsub.s32 0, %v1429
        %v1431 = vrot.slane %v1427, %v1430
        %v1432 = vlaneseq
        %v1433 = vshrl.u32 %v1432, 7
        %v1434 = vsub.s32 1, %v1433
        %v1435 = vrot.slane %v1427, %v1434
        %vm1436 = vcmp.eq.s32.totalorder %v1431, 1
        %vm1437 = vcmp.eq.s32.totalorder %v1435, 1
        %v1438 = vsel %vm1436, %v1423, 0.0
        %v1439 = vsel %vm1437, %v1424, 0.0
        %v1440 = vadd.f32 %v1416, %v1438
        %v1441 = vadd.f32 %v1417, %v1439
        %1442 = vrot.lane.b32.xlu0 %v1289, 112
        %v1443 = vpop.permute.xlu0 %1442
        %1444 = vrot.lane.b32.xlu0 %v1291, 112
        %v1445 = vpop.permute.xlu0 %1444
        %vm1446 = vcmp.lt.s32.totalorder %v1306, 112
        %v1447 = vsel %vm1446, %v1443, %v1445
        %v1448 = vsel %vm1446, %v1445, %v1443
        %v1449 = vsel %vm1425, 1, 0
        %v1450 = vlaneseq
        %v1451 = vshrl.u32 %v1450, 7
        %v1452 = vsub.s32 0, %v1451
        %v1453 = vrot.slane %v1449, %v1452
        %v1454 = vlaneseq
        %v1455 = vshrl.u32 %v1454, 7
        %v1456 = vsub.s32 1, %v1455
        %v1457 = vrot.slane %v1449, %v1456
        %vm1458 = vcmp.eq.s32.totalorder %v1453, 1
        %vm1459 = vcmp.eq.s32.totalorder %v1457, 1
        %v1460 = vsel %vm1458, %v1447, 0.0
        %v1461 = vsel %vm1459, %v1448, 0.0
        %v1462 = vadd.f32 %v1440, %v1460
        %v1463 = vadd.f32 %v1441, %v1461
        %1464 = vrot.lane.b32.xlu0 %v1295, 111
        %v1465 = vpop.permute.xlu0 %1464
        %1466 = vrot.lane.b32.xlu0 %v1297, 111
        %v1467 = vpop.permute.xlu0 %1466
        %vm1468 = vcmp.lt.s32.totalorder %v1306, 111
        %v1469 = vsel %vm1468, %v1465, %v1467
        %v1470 = vsel %vm1468, %v1467, %v1465
        %vm1471 = vmand %vm1425, %vm1355
        %v1472 = vsel %vm1471, 1, 0
        %v1473 = vlaneseq
        %v1474 = vshrl.u32 %v1473, 7
        %v1475 = vsub.s32 0, %v1474
        %v1476 = vrot.slane %v1472, %v1475
        %v1477 = vlaneseq
        %v1478 = vshrl.u32 %v1477, 7
        %v1479 = vsub.s32 1, %v1478
        %v1480 = vrot.slane %v1472, %v1479
        %vm1481 = vcmp.eq.s32.totalorder %v1476, 1
        %vm1482 = vcmp.eq.s32.totalorder %v1480, 1
        %v1483 = vsel %vm1481, %v1469, 0.0
        %v1484 = vsel %vm1482, %v1470, 0.0
        %v1485 = vadd.f32 %v1462, %v1483
        %v1486 = vadd.f32 %v1463, %v1484
        %v1487 = vld [vmem:[%s6] sm:$0xf]
        %1489 = vset.pattern.permute.xlu0 0
        %1490 = vperm.xlu0 %1489, %v1487
        %v1491 = vpop.permute.xlu0 %1490
        %v1493 = vadd.f32 %v1485, %v1491
        %v1494 = vadd.f32 %v1486, %v1491
        %v1497 = vcombine.low %v1493, %v1494
        %1499 = vst [vmem:[%s340] sm:$0xff] %v1497
        %s1500 = sand.u32 %s226, 1
        %s1501 = scalar_lea.sflag [#allocation4], %s1500
        %s1502 = sand.u32 %s226, 1
        %s1503 = smul.addr %s1502, 8
        %s1504 = scalar_lea.vmem [#allocation5], %s1503
        // Predicated region
        $region61: #{tpu_custom_call.1} parent=55 // pred_check
          %p1505 = pneg %p236
        $region62: #{tpu_custom_call.1} parent=55 // pred_check_branch
          %1507 = sbr.rel (%p1505) target = $region64
        $region63: #{tpu_custom_call.1} parent=55 // pred_region
          %s1509 = ssub.s32 128, 128
          %1510 = vsyncadd %s1501, %s1509
          %s1511 = smul.addr %s24, 2
          %s1512 = smul.addr %s1511, 64
          %s1513 = scalar_lea.hbm %s9, %s1512
          %s1515 = sshll.u32 %s1504, 4
          %s1516 = int_to_ptr.vmem [resolvable:$true] %s1515
          %1518 = dma.vmem_to_hbm [thread:$0]  %s1516, 128, %s1513, %s1501
        $region64: #{tpu_custom_call.1} parent=55 // pred_fallthru
          _
      $region56: #{tpu_custom_call.1} parent=5 // pred_fallthru
        _
      %p1519 = scmp.le.s32.totalorder 2, %s19
      // Predicated region
      $region65: #{tpu_custom_call.1} parent=5 // pred_check
        %p1520 = pneg %p1519
      $region66: #{tpu_custom_call.1} parent=5 // pred_check_branch
        %1522 = sbr.rel (%p1520) target = $region68
      $region67: #{tpu_custom_call.1} parent=5 // pred_region
        %s1523 = ssub.s32 %s19, 2
        // Predicated region
        $region69: #{tpu_custom_call.1} parent=67 // pred_check
          %p1524 = pneg %p242
        $region70: #{tpu_custom_call.1} parent=67 // pred_check_branch
          %1526 = sbr.rel (%p1524) target = $region72
        $region71: #{tpu_custom_call.1} parent=67 // pred_region
          %s1527 = sand.u32 %s227, 1
          %s1528 = scalar_lea.sflag [#allocation4], %s1527
          %s1529 = sand.u32 %s227, 1
          %s1530 = smul.addr %s1529, 8
          %s1531 = scalar_lea.vmem [#allocation5], %s1530
          %1532 = dma.done %s1528, 128
        $region72: #{tpu_custom_call.1} parent=67 // pred_fallthru
          _
      $region68: #{tpu_custom_call.1} parent=5 // pred_fallthru
        _
    $region6: #{tpu_custom_call.1} parent=1 // loop_footer
      %s23 = sadd.s32 1, %s19
    $region7: #{tpu_custom_call.1} parent=1 // loop_footer_branch
      %18 = sbr.rel target = $region3
    $region8: #{tpu_custom_call.1} parent=1 // loop_exit
      _
    %1533 = vsyncpa [#allocation3], 1
    %s1534 = scalar_lea.sflag [#allocation3], 1
    %1535 = vsyncpa %s1534, 1
    %1536 = vsyncpa [#allocation4], 1
    %s1537 = scalar_lea.sflag [#allocation4], 1
    %1538 = vsyncpa %s1537, 1

</llo_original>
